<compile_context>
chip_gen: v5e
topology: v5e:2x2
jax: 0.10.0
libtpu: 0.0.40
codegen_flags: <defaults>
</compile_context>

<pallas_src>
import math
from functools import partial

import jax
import jax.numpy as jnp
from jax import lax
from jax.experimental import pallas as pl
from jax.experimental.pallas import tpu as pltpu


def _round_up(v: int, m: int) -> int:
    return ((v + m - 1) // m) * m


def _ff_kernel(x_ref, gamma_ref, beta_ref, w1v_ref, w1g_ref, b1v_ref, b1g_ref,
               w2_ref, b2_ref, o_ref, xn_ref, acc_ref, *, eps, approximate_gelu):
    # Grid: (row-tile index i, d_ff-block index j). j is the inner/"arbitrary"
    # (reduction) axis for Linear-2; the output block is resident across j.
    j = pl.program_id(1)

    @pl.when(j == 0)
    def _():
        # ---- LayerNorm over the feature dim (f32 statistics) ----
        x = x_ref[...].astype(jnp.float32)
        mean = jnp.mean(x, axis=-1, keepdims=True)
        var = jnp.mean(jnp.square(x - mean), axis=-1, keepdims=True)
        xn = (x - mean) * lax.rsqrt(var + eps)
        xn = xn * gamma_ref[...].astype(jnp.float32) + beta_ref[...].astype(jnp.float32)
        xn_ref[...] = xn.astype(xn_ref.dtype)          # cached for all d_ff blocks
        acc_ref[...] = jnp.zeros_like(acc_ref)         # f32 accumulator for Linear-2

    xn = xn_ref[...]

    # ---- Linear 1 (value & gate halves separately) on this d_ff block ----
    hv = jnp.dot(xn, w1v_ref[...], preferred_element_type=jnp.float32) \
        + b1v_ref[...].astype(jnp.float32)
    hg = jnp.dot(xn, w1g_ref[...], preferred_element_type=jnp.float32) \
        + b1g_ref[...].astype(jnp.float32)

    # ---- GEGLU: value * gelu(gate) ----
    if approximate_gelu:
        # tanh approximation runs on the EUP (useful on v5e); not bit-exact vs torch.
        gelu_g = jax.nn.gelu(hg, approximate=True)
    else:
        gelu_g = 0.5 * hg * (1.0 + lax.erf(hg * (1.0 / math.sqrt(2.0))))
    z = (hv * gelu_g).astype(w2_ref.dtype)

    # Dropout(p=0.0) is the identity.

    # ---- Linear 2 partial product for this d_ff block, accumulated in f32 ----
    acc_ref[...] += jnp.dot(z, w2_ref[...], preferred_element_type=jnp.float32)

    @pl.when(j == pl.num_programs(1) - 1)
    def _():
        o_ref[...] = (acc_ref[...] + b2_ref[...].astype(jnp.float32)).astype(o_ref.dtype)


def feedforward(x, gamma, beta, w1, b1, w2, b2, *,
                row_tile=256, ff_tile=512, eps=1e-5,
                matmul_dtype=jnp.bfloat16, approximate_gelu=False,
                vmem_limit_bytes=48 * 1024 * 1024,
                single_buffer_constants=True):
    """FT-Transformer FeedForward forward pass.

    x: (batch, seq, d_embedding).
    Linear weights are stored (in, out), i.e. transposed relative to torch's
    nn.Linear.weight; w1: (d_emb, 2*d_ff), w2: (d_ff, d_emb).
    """
    batch, seq, d_emb = x.shape
    d_ff = w2.shape[0]
    assert w1.shape == (d_emb, 2 * d_ff) and w2.shape == (d_ff, d_emb)
    assert b1.shape == (2 * d_ff,) and b2.shape == (d_emb,)
    rows = batch * seq

    # ---- tile sizing -------------------------------------------------------
    # Row tile: big enough to feed the MXU; clamp to the 8-aligned problem size.
    # Ragged tails are handled by pl.cdiv (Pallas masks partial output blocks;
    # all math is row-independent so pad rows cannot contaminate valid rows).
    row_tile = min(_round_up(row_tile, 8), _round_up(rows, 8))
    # d_ff tile: stream the weights in ff_tile-wide blocks so VMEM stays
    # bounded (important on v7x). A block narrower than d_ff must be a
    # multiple of 128 lanes.
    if ff_tile >= d_ff:
        ff_tile = d_ff
    else:
        ff_tile = _round_up(min(ff_tile, d_ff), 128)
    # Zero-pad the d_ff axis so every weight block is full: padded b1/w1
    # columns give z == 0 and padded w2 rows are 0, so tail blocks add exactly 0.
    d_ff_p = _round_up(d_ff, ff_tile)
    pad_ff = d_ff_p - d_ff

    grid = (pl.cdiv(rows, row_tile), d_ff_p // ff_tile)

    # ---- operand prep (layout + dtype) -------------------------------------
    x2 = x.reshape(rows, d_emb)
    gamma2 = gamma.reshape(1, d_emb).astype(jnp.float32)
    beta2 = beta.reshape(1, d_emb).astype(jnp.float32)
    b2_2 = b2.reshape(1, d_emb).astype(jnp.float32)

    w1v = w1[:, :d_ff].astype(matmul_dtype)            # value half
    w1g = w1[:, d_ff:].astype(matmul_dtype)            # gate half
    b1v = b1[:d_ff].reshape(1, d_ff).astype(jnp.float32)
    b1g = b1[d_ff:].reshape(1, d_ff).astype(jnp.float32)
    w2c = w2.astype(matmul_dtype)
    if pad_ff:
        w1v = jnp.pad(w1v, ((0, 0), (0, pad_ff)))
        w1g = jnp.pad(w1g, ((0, 0), (0, pad_ff)))
        b1v = jnp.pad(b1v, ((0, 0), (0, pad_ff)))
        b1g = jnp.pad(b1g, ((0, 0), (0, pad_ff)))
        w2c = jnp.pad(w2c, ((0, pad_ff), (0, 0)))

    kernel = partial(_ff_kernel, eps=eps, approximate_gelu=approximate_gelu)

    def _run(use_single_buffer):
        def const_spec(shape):
            # Constant index_map -> never re-DMA'd across grid steps; one
            # buffer is enough (saves VMEM, esp. on v7x).
            if use_single_buffer:
                return pl.BlockSpec(shape, lambda i, j: (0, 0),
                                    pipeline_mode=pl.Buffered(1))
            return pl.BlockSpec(shape, lambda i, j: (0, 0))

        in_specs = [
            pl.BlockSpec((row_tile, d_emb), lambda i, j: (i, 0)),   # x rows
            const_spec((1, d_emb)),                                  # gamma
            const_spec((1, d_emb)),                                  # beta
            pl.BlockSpec((d_emb, ff_tile), lambda i, j: (0, j)),     # w1 value half
            pl.BlockSpec((d_emb, ff_tile), lambda i, j: (0, j)),     # w1 gate half
            pl.BlockSpec((1, ff_tile), lambda i, j: (0, j)),         # b1 value half
            pl.BlockSpec((1, ff_tile), lambda i, j: (0, j)),         # b1 gate half
            pl.BlockSpec((ff_tile, d_emb), lambda i, j: (j, 0)),     # w2
            const_spec((1, d_emb)),                                  # b2
        ]

        return pl.pallas_call(
            kernel,
            out_shape=jax.ShapeDtypeStruct((rows, d_emb), x.dtype),
            grid_spec=pltpu.PrefetchScalarGridSpec(
                num_scalar_prefetch=0,
                grid=grid,
                in_specs=in_specs,
                out_specs=pl.BlockSpec((row_tile, d_emb), lambda i, j: (i, 0)),
                scratch_shapes=[
                    pltpu.VMEM((row_tile, d_emb), matmul_dtype),   # cached LayerNorm output
                    pltpu.VMEM((row_tile, d_emb), jnp.float32),    # f32 accumulator (Linear-2)
                ],
            ),
            compiler_params=pltpu.CompilerParams(
                dimension_semantics=("parallel", "arbitrary"),
                vmem_limit_bytes=vmem_limit_bytes,
            ),
        )(x2, gamma2, beta2, w1v, w1g, b1v, b1g, w2c, b2_2)

    if single_buffer_constants:
        try:
            out = _run(True)
        except Exception:
            # pl.Buffered(1) not supported by this jax/pallas build ->
            # fall back to default double-buffering (correctness identical).
            out = _run(False)
    else:
        out = _run(False)

    return out.reshape(batch, seq, d_emb)


def _reference(x, gamma, beta, w1, b1, w2, b2, eps=1e-5):
    xf = x.astype(jnp.float32)
    mean = jnp.mean(xf, axis=-1, keepdims=True)
    var = jnp.mean(jnp.square(xf - mean), axis=-1, keepdims=True)
    xn = (xf - mean) * lax.rsqrt(var + eps) * gamma + beta
    h = xn @ w1 + b1
    d_ff = w2.shape[0]
    a, g = h[..., :d_ff], h[..., d_ff:]
    z = a * (0.5 * g * (1.0 + lax.erf(g / math.sqrt(2.0))))
    return (z @ w2 + b2).astype(x.dtype)


if __name__ == "__main__":
    # Small but representative shapes: lane-aligned d_emb, d_ff chosen so the
    # second run exercises ragged row tiles AND streamed/padded d_ff blocks.
    batch, seq = 2, 24          # rows = 48
    d_emb, d_ff = 128, 192

    key = jax.random.PRNGKey(0)
    kx, kg, kb, kw1, kb1, kw2, kb2 = jax.random.split(key, 7)

    x = jax.random.normal(kx, (batch, seq, d_emb), dtype=jnp.float32)
    gamma = 1.0 + 0.01 * jax.random.normal(kg, (d_emb,), dtype=jnp.float32)
    beta = 0.01 * jax.random.normal(kb, (d_emb,), dtype=jnp.float32)
    w1 = jax.random.normal(kw1, (d_emb, 2 * d_ff), dtype=jnp.float32) / math.sqrt(d_emb)
    b1 = 0.01 * jax.random.normal(kb1, (2 * d_ff,), dtype=jnp.float32)
    w2 = jax.random.normal(kw2, (d_ff, d_emb), dtype=jnp.float32) / math.sqrt(d_ff)
    b2 = 0.01 * jax.random.normal(kb2, (d_emb,), dtype=jnp.float32)

    ref = _reference(x, gamma, beta, w1, b1, w2, b2)

    # 1) f32 matmul path, single (rows, d_ff) block -> near-exact vs reference.
    out_f32 = feedforward(x, gamma, beta, w1, b1, w2, b2,
                          matmul_dtype=jnp.float32)
    out_f32 = jax.block_until_ready(out_f32)
    assert out_f32.shape == (batch, seq, d_emb)
    assert jnp.allclose(out_f32, ref, atol=1e-4, rtol=1e-4), "f32 path mismatch"

    # 2) Default bf16 MXU path with ragged row tiles and streamed d_ff blocks
    #    (row grid = 2 with a partial tail, d_ff grid = 2 with a zero-padded tail).
    out_bf16 = feedforward(x, gamma, beta, w1, b1, w2, b2,
                           row_tile=32, ff_tile=128)
    out_bf16 = jax.block_until_ready(out_bf16)
    assert out_bf16.shape == (batch, seq, d_emb)
    assert jnp.allclose(out_bf16, ref, atol=5e-2, rtol=5e-2), "bf16 path mismatch"

    print("KERNEL_OK")
</pallas_src>

<mosaic_0001>
module attributes {stable_mosaic.version = 11 : i64} {
  func.func @_ff_kernel(%arg0: i32, %arg1: i32, %arg2: memref<48x128xf32, #tpu.memory_space<vmem>>, %arg3: memref<1x128xf32, #tpu.memory_space<vmem>>, %arg4: memref<1x128xf32, #tpu.memory_space<vmem>>, %arg5: memref<128x192xf32, #tpu.memory_space<vmem>>, %arg6: memref<128x192xf32, #tpu.memory_space<vmem>>, %arg7: memref<1x192xf32, #tpu.memory_space<vmem>>, %arg8: memref<1x192xf32, #tpu.memory_space<vmem>>, %arg9: memref<192x128xf32, #tpu.memory_space<vmem>>, %arg10: memref<1x128xf32, #tpu.memory_space<vmem>>, %arg11: memref<48x128xf32, #tpu.memory_space<vmem>>, %arg12: memref<48x128xf32, #tpu.memory_space<vmem>>, %arg13: memref<48x128xf32, #tpu.memory_space<vmem>>) attributes {dimension_semantics = [#tpu.dimension_semantics<parallel>, #tpu.dimension_semantics<arbitrary>], iteration_bounds = array<i64: 1, 1>, scalar_prefetch = 0 : i64, scratch_operands = 2 : i64, tpu.core_type = #tpu.core_type<tc>, window_params = [{transform_indices = @transform_0, window_bounds = array<i64: 48, 128>}, {pipeline_mode = #tpu.pipeline_mode<synchronous>, transform_indices = @transform_1, window_bounds = array<i64: 1, 128>}, {pipeline_mode = #tpu.pipeline_mode<synchronous>, transform_indices = @transform_2, window_bounds = array<i64: 1, 128>}, {transform_indices = @transform_3, window_bounds = array<i64: 128, 192>}, {transform_indices = @transform_4, window_bounds = array<i64: 128, 192>}, {transform_indices = @transform_5, window_bounds = array<i64: 1, 192>}, {transform_indices = @transform_6, window_bounds = array<i64: 1, 192>}, {transform_indices = @transform_7, window_bounds = array<i64: 192, 128>}, {pipeline_mode = #tpu.pipeline_mode<synchronous>, transform_indices = @transform_8, window_bounds = array<i64: 1, 128>}, {transform_indices = @transform_9, window_bounds = array<i64: 48, 128>}]} {
    %c0_i32 = arith.constant 0 : i32
    %0 = arith.cmpi eq, %arg1, %c0_i32 : i32
    %1 = arith.extui %0 : i1 to i32
    %c0_i32_0 = arith.constant 0 : i32
    %2 = arith.cmpi ne, %1, %c0_i32_0 : i32
    scf.if %2 {
      %c0_23 = arith.constant 0 : index
      %c0_24 = arith.constant 0 : index
      %31 = vector.load %arg2[%c0_23, %c0_24] : memref<48x128xf32, #tpu.memory_space<vmem>>, vector<48x128xf32>
      %cst_25 = arith.constant dense<0.000000e+00> : vector<48xf32>
      %32 = vector.multi_reduction <add>, %31, %cst_25 [1] : vector<48x128xf32> to vector<48xf32>
      %33 = vector.shape_cast %32 : vector<48xf32> to vector<48x1xf32>
      %cst_26 = arith.constant 1.280000e+02 : f32
      %34 = vector.broadcast %cst_26 : f32 to vector<48x1xf32>
      %35 = arith.divf %33, %34 : vector<48x1xf32>
      %36 = vector.broadcast %35 : vector<48x1xf32> to vector<48x128xf32>
      %37 = arith.subf %31, %36 : vector<48x128xf32>
      %38 = arith.mulf %37, %37 : vector<48x128xf32>
      %cst_27 = arith.constant dense<0.000000e+00> : vector<48xf32>
      %39 = vector.multi_reduction <add>, %38, %cst_27 [1] : vector<48x128xf32> to vector<48xf32>
      %40 = vector.shape_cast %39 : vector<48xf32> to vector<48x1xf32>
      %cst_28 = arith.constant 1.280000e+02 : f32
      %41 = vector.broadcast %cst_28 : f32 to vector<48x1xf32>
      %42 = arith.divf %40, %41 : vector<48x1xf32>
      %43 = vector.broadcast %35 : vector<48x1xf32> to vector<48x128xf32>
      %44 = arith.subf %31, %43 : vector<48x128xf32>
      %cst_29 = arith.constant 9.99999974E-6 : f32
      %45 = vector.broadcast %cst_29 : f32 to vector<48x1xf32>
      %46 = arith.addf %42, %45 : vector<48x1xf32>
      %47 = math.rsqrt %46 : vector<48x1xf32>
      %48 = vector.broadcast %47 : vector<48x1xf32> to vector<48x128xf32>
      %49 = arith.mulf %44, %48 : vector<48x128xf32>
      %c0_30 = arith.constant 0 : index
      %c0_31 = arith.constant 0 : index
      %50 = vector.load %arg3[%c0_30, %c0_31] : memref<1x128xf32, #tpu.memory_space<vmem>>, vector<1x128xf32>
      %51 = vector.broadcast %50 : vector<1x128xf32> to vector<48x128xf32>
      %52 = arith.mulf %49, %51 : vector<48x128xf32>
      %c0_32 = arith.constant 0 : index
      %c0_33 = arith.constant 0 : index
      %53 = vector.load %arg4[%c0_32, %c0_33] : memref<1x128xf32, #tpu.memory_space<vmem>>, vector<1x128xf32>
      %54 = vector.broadcast %53 : vector<1x128xf32> to vector<48x128xf32>
      %55 = arith.addf %52, %54 : vector<48x128xf32>
      %c0_34 = arith.constant 0 : index
      %c0_35 = arith.constant 0 : index
      %56 = vector.load %arg12[%c0_34, %c0_35] : memref<48x128xf32, #tpu.memory_space<vmem>>, vector<48x128xf32>
      tpu.vector_store %arg12[%c0_34, %c0_35], %55 {strides = array<i32>} : memref<48x128xf32, #tpu.memory_space<vmem>>, vector<48x128xf32>,
      %cst_36 = arith.constant 0.000000e+00 : f32
      %57 = vector.broadcast %cst_36 : f32 to vector<48x128xf32>
      %c0_37 = arith.constant 0 : index
      %c0_38 = arith.constant 0 : index
      %58 = vector.load %arg13[%c0_37, %c0_38] : memref<48x128xf32, #tpu.memory_space<vmem>>, vector<48x128xf32>
      tpu.vector_store %arg13[%c0_37, %c0_38], %57 {strides = array<i32>} : memref<48x128xf32, #tpu.memory_space<vmem>>, vector<48x128xf32>,
    } else {
    }
    %c0 = arith.constant 0 : index
    %c0_1 = arith.constant 0 : index
    %3 = vector.load %arg12[%c0, %c0_1] : memref<48x128xf32, #tpu.memory_space<vmem>>, vector<48x128xf32>
    %c0_2 = arith.constant 0 : index
    %c0_3 = arith.constant 0 : index
    %4 = vector.load %arg5[%c0_2, %c0_3] : memref<128x192xf32, #tpu.memory_space<vmem>>, vector<128x192xf32>
    %cst = arith.constant dense<0.000000e+00> : vector<48x192xf32>
    %5 = tpu.matmul %3, %4, %cst {dimension_numbers = #tpu.dot_dimension_numbers<[1], [0], [0], [1], [0, 0, 1, 1], [], []>} : vector<48x128xf32>, vector<128x192xf32>, vector<48x192xf32> -> vector<48x192xf32>
    %c0_4 = arith.constant 0 : index
    %c0_5 = arith.constant 0 : index
    %6 = vector.load %arg7[%c0_4, %c0_5] : memref<1x192xf32, #tpu.memory_space<vmem>>, vector<1x192xf32>
    %7 = vector.broadcast %6 : vector<1x192xf32> to vector<48x192xf32>
    %8 = arith.addf %5, %7 : vector<48x192xf32>
    %c0_6 = arith.constant 0 : index
    %c0_7 = arith.constant 0 : index
    %9 = vector.load %arg6[%c0_6, %c0_7] : memref<128x192xf32, #tpu.memory_space<vmem>>, vector<128x192xf32>
    %cst_8 = arith.constant dense<0.000000e+00> : vector<48x192xf32>
    %10 = tpu.matmul %3, %9, %cst_8 {dimension_numbers = #tpu.dot_dimension_numbers<[1], [0], [0], [1], [0, 0, 1, 1], [], []>} : vector<48x128xf32>, vector<128x192xf32>, vector<48x192xf32> -> vector<48x192xf32>
    %c0_9 = arith.constant 0 : index
    %c0_10 = arith.constant 0 : index
    %11 = vector.load %arg8[%c0_9, %c0_10] : memref<1x192xf32, #tpu.memory_space<vmem>>, vector<1x192xf32>
    %12 = vector.broadcast %11 : vector<1x192xf32> to vector<48x192xf32>
    %13 = arith.addf %10, %12 : vector<48x192xf32>
    %cst_11 = arith.constant 5.000000e-01 : f32
    %14 = vector.broadcast %cst_11 : f32 to vector<48x192xf32>
    %15 = arith.mulf %14, %13 : vector<48x192xf32>
    %cst_12 = arith.constant 0.707106769 : f32
    %16 = vector.broadcast %cst_12 : f32 to vector<48x192xf32>
    %17 = arith.mulf %13, %16 : vector<48x192xf32>
    %18 = math.erf %17 : vector<48x192xf32>
    %cst_13 = arith.constant 1.000000e+00 : f32
    %19 = vector.broadcast %cst_13 : f32 to vector<48x192xf32>
    %20 = arith.addf %19, %18 : vector<48x192xf32>
    %21 = arith.mulf %15, %20 : vector<48x192xf32>
    %22 = arith.mulf %8, %21 : vector<48x192xf32>
    %c0_14 = arith.constant 0 : index
    %c0_15 = arith.constant 0 : index
    %23 = vector.load %arg13[%c0_14, %c0_15] : memref<48x128xf32, #tpu.memory_space<vmem>>, vector<48x128xf32>
    %c0_16 = arith.constant 0 : index
    %c0_17 = arith.constant 0 : index
    %24 = vector.load %arg9[%c0_16, %c0_17] : memref<192x128xf32, #tpu.memory_space<vmem>>, vector<192x128xf32>
    %cst_18 = arith.constant dense<0.000000e+00> : vector<48x128xf32>
    %25 = tpu.matmul %22, %24, %cst_18 {dimension_numbers = #tpu.dot_dimension_numbers<[1], [0], [0], [1], [0, 0, 1, 1], [], []>} : vector<48x192xf32>, vector<192x128xf32>, vector<48x128xf32> -> vector<48x128xf32>
    %26 = arith.addf %23, %25 : vector<48x128xf32>
    %c0_19 = arith.constant 0 : index
    %c0_20 = arith.constant 0 : index
    %27 = vector.load %arg13[%c0_19, %c0_20] : memref<48x128xf32, #tpu.memory_space<vmem>>, vector<48x128xf32>
    tpu.vector_store %arg13[%c0_19, %c0_20], %26 {strides = array<i32>} : memref<48x128xf32, #tpu.memory_space<vmem>>, vector<48x128xf32>,
    %c0_i32_21 = arith.constant 0 : i32
    %28 = arith.cmpi eq, %arg1, %c0_i32_21 : i32
    %29 = arith.extui %28 : i1 to i32
    %c0_i32_22 = arith.constant 0 : i32
    %30 = arith.cmpi ne, %29, %c0_i32_22 : i32
    scf.if %30 {
      %c0_23 = arith.constant 0 : index
      %c0_24 = arith.constant 0 : index
      %31 = vector.load %arg13[%c0_23, %c0_24] : memref<48x128xf32, #tpu.memory_space<vmem>>, vector<48x128xf32>
      %c0_25 = arith.constant 0 : index
      %c0_26 = arith.constant 0 : index
      %32 = vector.load %arg10[%c0_25, %c0_26] : memref<1x128xf32, #tpu.memory_space<vmem>>, vector<1x128xf32>
      %33 = vector.broadcast %32 : vector<1x128xf32> to vector<48x128xf32>
      %34 = arith.addf %31, %33 : vector<48x128xf32>
      %c0_27 = arith.constant 0 : index
      %c0_28 = arith.constant 0 : index
      %35 = vector.load %arg11[%c0_27, %c0_28] : memref<48x128xf32, #tpu.memory_space<vmem>>, vector<48x128xf32>
      tpu.vector_store %arg11[%c0_27, %c0_28], %34 {strides = array<i32>} : memref<48x128xf32, #tpu.memory_space<vmem>>, vector<48x128xf32>,
    } else {
    }
    return
  }
  func.func @transform_0(%arg0: i32, %arg1: i32) -> (i32, i32) {
    %c0_i32 = arith.constant 0 : i32
    %c0_i32_0 = arith.constant 0 : i32
    return %arg0, %c0_i32 : i32, i32
  }
  func.func @transform_1(%arg0: i32, %arg1: i32) -> (i32, i32) {
    %c0_i32 = arith.constant 0 : i32
    %c0_i32_0 = arith.constant 0 : i32
    %c0_i32_1 = arith.constant 0 : i32
    return %c0_i32, %c0_i32_0 : i32, i32
  }
  func.func @transform_2(%arg0: i32, %arg1: i32) -> (i32, i32) {
    %c0_i32 = arith.constant 0 : i32
    %c0_i32_0 = arith.constant 0 : i32
    %c0_i32_1 = arith.constant 0 : i32
    return %c0_i32, %c0_i32_0 : i32, i32
  }
  func.func @transform_3(%arg0: i32, %arg1: i32) -> (i32, i32) {
    %c0_i32 = arith.constant 0 : i32
    %c0_i32_0 = arith.constant 0 : i32
    return %c0_i32, %arg1 : i32, i32
  }
  func.func @transform_4(%arg0: i32, %arg1: i32) -> (i32, i32) {
    %c0_i32 = arith.constant 0 : i32
    %c0_i32_0 = arith.constant 0 : i32
    return %c0_i32, %arg1 : i32, i32
  }
  func.func @transform_5(%arg0: i32, %arg1: i32) -> (i32, i32) {
    %c0_i32 = arith.constant 0 : i32
    %c0_i32_0 = arith.constant 0 : i32
    return %c0_i32, %arg1 : i32, i32
  }
  func.func @transform_6(%arg0: i32, %arg1: i32) -> (i32, i32) {
    %c0_i32 = arith.constant 0 : i32
    %c0_i32_0 = arith.constant 0 : i32
    return %c0_i32, %arg1 : i32, i32
  }
  func.func @transform_7(%arg0: i32, %arg1: i32) -> (i32, i32) {
    %c0_i32 = arith.constant 0 : i32
    %c0_i32_0 = arith.constant 0 : i32
    return %arg1, %c0_i32 : i32, i32
  }
  func.func @transform_8(%arg0: i32, %arg1: i32) -> (i32, i32) {
    %c0_i32 = arith.constant 0 : i32
    %c0_i32_0 = arith.constant 0 : i32
    %c0_i32_1 = arith.constant 0 : i32
    return %c0_i32, %c0_i32_0 : i32, i32
  }
  func.func @transform_9(%arg0: i32, %arg1: i32) -> (i32, i32) {
    %c0_i32 = arith.constant 0 : i32
    %c0_i32_0 = arith.constant 0 : i32
    return %arg0, %c0_i32 : i32, i32
  }
}

module attributes {stable_mosaic.version = 11 : i64} {
  func.func @_ff_kernel(%arg0: i32, %arg1: i32, %arg2: memref<48x128xf32, #tpu.memory_space<vmem>>, %arg3: memref<1x128xf32, #tpu.memory_space<vmem>>, %arg4: memref<1x128xf32, #tpu.memory_space<vmem>>, %arg5: memref<128x192xf32, #tpu.memory_space<vmem>>, %arg6: memref<128x192xf32, #tpu.memory_space<vmem>>, %arg7: memref<1x192xf32, #tpu.memory_space<vmem>>, %arg8: memref<1x192xf32, #tpu.memory_space<vmem>>, %arg9: memref<192x128xf32, #tpu.memory_space<vmem>>, %arg10: memref<1x128xf32, #tpu.memory_space<vmem>>, %arg11: memref<48x128xf32, #tpu.memory_space<vmem>>, %arg12: memref<48x128xf32, #tpu.memory_space<vmem>>, %arg13: memref<48x128xf32, #tpu.memory_space<vmem>>) attributes {dimension_semantics = [#tpu.dimension_semantics<parallel>, #tpu.dimension_semantics<arbitrary>], iteration_bounds = array<i64: 1, 1>, scalar_prefetch = 0 : i64, scratch_operands = 2 : i64, tpu.core_type = #tpu.core_type<tc>, window_params = [{transform_indices = @transform_0, window_bounds = array<i64: 48, 128>}, {pipeline_mode = #tpu.pipeline_mode<synchronous>, transform_indices = @transform_1, window_bounds = array<i64: 1, 128>}, {pipeline_mode = #tpu.pipeline_mode<synchronous>, transform_indices = @transform_2, window_bounds = array<i64: 1, 128>}, {transform_indices = @transform_3, window_bounds = array<i64: 128, 192>}, {transform_indices = @transform_4, window_bounds = array<i64: 128, 192>}, {transform_indices = @transform_5, window_bounds = array<i64: 1, 192>}, {transform_indices = @transform_6, window_bounds = array<i64: 1, 192>}, {transform_indices = @transform_7, window_bounds = array<i64: 192, 128>}, {pipeline_mode = #tpu.pipeline_mode<synchronous>, transform_indices = @transform_8, window_bounds = array<i64: 1, 128>}, {transform_indices = @transform_9, window_bounds = array<i64: 48, 128>}]} {
    %c0_i32 = arith.constant 0 : i32
    %0 = arith.cmpi eq, %arg1, %c0_i32 : i32
    %1 = arith.extui %0 : i1 to i32
    %c0_i32_0 = arith.constant 0 : i32
    %2 = arith.cmpi ne, %1, %c0_i32_0 : i32
    scf.if %2 {
      %c0_23 = arith.constant 0 : index
      %c0_24 = arith.constant 0 : index
      %31 = vector.load %arg2[%c0_23, %c0_24] : memref<48x128xf32, #tpu.memory_space<vmem>>, vector<48x128xf32>
      %cst_25 = arith.constant dense<0.000000e+00> : vector<48xf32>
      %32 = vector.multi_reduction <add>, %31, %cst_25 [1] : vector<48x128xf32> to vector<48xf32>
      %33 = vector.shape_cast %32 : vector<48xf32> to vector<48x1xf32>
      %cst_26 = arith.constant 1.280000e+02 : f32
      %34 = vector.broadcast %cst_26 : f32 to vector<48x1xf32>
      %35 = arith.divf %33, %34 : vector<48x1xf32>
      %36 = vector.broadcast %35 : vector<48x1xf32> to vector<48x128xf32>
      %37 = arith.subf %31, %36 : vector<48x128xf32>
      %38 = arith.mulf %37, %37 : vector<48x128xf32>
      %cst_27 = arith.constant dense<0.000000e+00> : vector<48xf32>
      %39 = vector.multi_reduction <add>, %38, %cst_27 [1] : vector<48x128xf32> to vector<48xf32>
      %40 = vector.shape_cast %39 : vector<48xf32> to vector<48x1xf32>
      %cst_28 = arith.constant 1.280000e+02 : f32
      %41 = vector.broadcast %cst_28 : f32 to vector<48x1xf32>
      %42 = arith.divf %40, %41 : vector<48x1xf32>
      %43 = vector.broadcast %35 : vector<48x1xf32> to vector<48x128xf32>
      %44 = arith.subf %31, %43 : vector<48x128xf32>
      %cst_29 = arith.constant 9.99999974E-6 : f32
      %45 = vector.broadcast %cst_29 : f32 to vector<48x1xf32>
      %46 = arith.addf %42, %45 : vector<48x1xf32>
      %47 = math.rsqrt %46 : vector<48x1xf32>
      %48 = vector.broadcast %47 : vector<48x1xf32> to vector<48x128xf32>
      %49 = arith.mulf %44, %48 : vector<48x128xf32>
      %c0_30 = arith.constant 0 : index
      %c0_31 = arith.constant 0 : index
      %50 = vector.load %arg3[%c0_30, %c0_31] : memref<1x128xf32, #tpu.memory_space<vmem>>, vector<1x128xf32>
      %51 = vector.broadcast %50 : vector<1x128xf32> to vector<48x128xf32>
      %52 = arith.mulf %49, %51 : vector<48x128xf32>
      %c0_32 = arith.constant 0 : index
      %c0_33 = arith.constant 0 : index
      %53 = vector.load %arg4[%c0_32, %c0_33] : memref<1x128xf32, #tpu.memory_space<vmem>>, vector<1x128xf32>
      %54 = vector.broadcast %53 : vector<1x128xf32> to vector<48x128xf32>
      %55 = arith.addf %52, %54 : vector<48x128xf32>
      %c0_34 = arith.constant 0 : index
      %c0_35 = arith.constant 0 : index
      %56 = vector.load %arg12[%c0_34, %c0_35] : memref<48x128xf32, #tpu.memory_space<vmem>>, vector<48x128xf32>
      tpu.vector_store %arg12[%c0_34, %c0_35], %55 {strides = array<i32>} : memref<48x128xf32, #tpu.memory_space<vmem>>, vector<48x128xf32>,
      %cst_36 = arith.constant 0.000000e+00 : f32
      %57 = vector.broadcast %cst_36 : f32 to vector<48x128xf32>
      %c0_37 = arith.constant 0 : index
      %c0_38 = arith.constant 0 : index
      %58 = vector.load %arg13[%c0_37, %c0_38] : memref<48x128xf32, #tpu.memory_space<vmem>>, vector<48x128xf32>
      tpu.vector_store %arg13[%c0_37, %c0_38], %57 {strides = array<i32>} : memref<48x128xf32, #tpu.memory_space<vmem>>, vector<48x128xf32>,
    } else {
    }
    %c0 = arith.constant 0 : index
    %c0_1 = arith.constant 0 : index
    %3 = vector.load %arg12[%c0, %c0_1] : memref<48x128xf32, #tpu.memory_space<vmem>>, vector<48x128xf32>
    %c0_2 = arith.constant 0 : index
    %c0_3 = arith.constant 0 : index
    %4 = vector.load %arg5[%c0_2, %c0_3] : memref<128x192xf32, #tpu.memory_space<vmem>>, vector<128x192xf32>
    %cst = arith.constant dense<0.000000e+00> : vector<48x192xf32>
    %5 = tpu.matmul %3, %4, %cst {dimension_numbers = #tpu.dot_dimension_numbers<[1], [0], [0], [1], [0, 0, 1, 1], [], []>} : vector<48x128xf32>, vector<128x192xf32>, vector<48x192xf32> -> vector<48x192xf32>
    %c0_4 = arith.constant 0 : index
    %c0_5 = arith.constant 0 : index
    %6 = vector.load %arg7[%c0_4, %c0_5] : memref<1x192xf32, #tpu.memory_space<vmem>>, vector<1x192xf32>
    %7 = vector.broadcast %6 : vector<1x192xf32> to vector<48x192xf32>
    %8 = arith.addf %5, %7 : vector<48x192xf32>
    %c0_6 = arith.constant 0 : index
    %c0_7 = arith.constant 0 : index
    %9 = vector.load %arg6[%c0_6, %c0_7] : memref<128x192xf32, #tpu.memory_space<vmem>>, vector<128x192xf32>
    %cst_8 = arith.constant dense<0.000000e+00> : vector<48x192xf32>
    %10 = tpu.matmul %3, %9, %cst_8 {dimension_numbers = #tpu.dot_dimension_numbers<[1], [0], [0], [1], [0, 0, 1, 1], [], []>} : vector<48x128xf32>, vector<128x192xf32>, vector<48x192xf32> -> vector<48x192xf32>
    %c0_9 = arith.constant 0 : index
    %c0_10 = arith.constant 0 : index
    %11 = vector.load %arg8[%c0_9, %c0_10] : memref<1x192xf32, #tpu.memory_space<vmem>>, vector<1x192xf32>
    %12 = vector.broadcast %11 : vector<1x192xf32> to vector<48x192xf32>
    %13 = arith.addf %10, %12 : vector<48x192xf32>
    %cst_11 = arith.constant 5.000000e-01 : f32
    %14 = vector.broadcast %cst_11 : f32 to vector<48x192xf32>
    %15 = arith.mulf %14, %13 : vector<48x192xf32>
    %cst_12 = arith.constant 0.707106769 : f32
    %16 = vector.broadcast %cst_12 : f32 to vector<48x192xf32>
    %17 = arith.mulf %13, %16 : vector<48x192xf32>
    %18 = math.erf %17 : vector<48x192xf32>
    %cst_13 = arith.constant 1.000000e+00 : f32
    %19 = vector.broadcast %cst_13 : f32 to vector<48x192xf32>
    %20 = arith.addf %19, %18 : vector<48x192xf32>
    %21 = arith.mulf %15, %20 : vector<48x192xf32>
    %22 = arith.mulf %8, %21 : vector<48x192xf32>
    %c0_14 = arith.constant 0 : index
    %c0_15 = arith.constant 0 : index
    %23 = vector.load %arg13[%c0_14, %c0_15] : memref<48x128xf32, #tpu.memory_space<vmem>>, vector<48x128xf32>
    %c0_16 = arith.constant 0 : index
    %c0_17 = arith.constant 0 : index
    %24 = vector.load %arg9[%c0_16, %c0_17] : memref<192x128xf32, #tpu.memory_space<vmem>>, vector<192x128xf32>
    %cst_18 = arith.constant dense<0.000000e+00> : vector<48x128xf32>
    %25 = tpu.matmul %22, %24, %cst_18 {dimension_numbers = #tpu.dot_dimension_numbers<[1], [0], [0], [1], [0, 0, 1, 1], [], []>} : vector<48x192xf32>, vector<192x128xf32>, vector<48x128xf32> -> vector<48x128xf32>
    %26 = arith.addf %23, %25 : vector<48x128xf32>
    %c0_19 = arith.constant 0 : index
    %c0_20 = arith.constant 0 : index
    %27 = vector.load %arg13[%c0_19, %c0_20] : memref<48x128xf32, #tpu.memory_space<vmem>>, vector<48x128xf32>
    tpu.vector_store %arg13[%c0_19, %c0_20], %26 {strides = array<i32>} : memref<48x128xf32, #tpu.memory_space<vmem>>, vector<48x128xf32>,
    %c0_i32_21 = arith.constant 0 : i32
    %28 = arith.cmpi eq, %arg1, %c0_i32_21 : i32
    %29 = arith.extui %28 : i1 to i32
    %c0_i32_22 = arith.constant 0 : i32
    %30 = arith.cmpi ne, %29, %c0_i32_22 : i32
    scf.if %30 {
      %c0_23 = arith.constant 0 : index
      %c0_24 = arith.constant 0 : index
      %31 = vector.load %arg13[%c0_23, %c0_24] : memref<48x128xf32, #tpu.memory_space<vmem>>, vector<48x128xf32>
      %c0_25 = arith.constant 0 : index
      %c0_26 = arith.constant 0 : index
      %32 = vector.load %arg10[%c0_25, %c0_26] : memref<1x128xf32, #tpu.memory_space<vmem>>, vector<1x128xf32>
      %33 = vector.broadcast %32 : vector<1x128xf32> to vector<48x128xf32>
      %34 = arith.addf %31, %33 : vector<48x128xf32>
      %c0_27 = arith.constant 0 : index
      %c0_28 = arith.constant 0 : index
      %35 = vector.load %arg11[%c0_27, %c0_28] : memref<48x128xf32, #tpu.memory_space<vmem>>, vector<48x128xf32>
      tpu.vector_store %arg11[%c0_27, %c0_28], %34 {strides = array<i32>} : memref<48x128xf32, #tpu.memory_space<vmem>>, vector<48x128xf32>,
    } else {
    }
    return
  }
  func.func @transform_0(%arg0: i32, %arg1: i32) -> (i32, i32) {
    %c0_i32 = arith.constant 0 : i32
    %c0_i32_0 = arith.constant 0 : i32
    return %arg0, %c0_i32 : i32, i32
  }
  func.func @transform_1(%arg0: i32, %arg1: i32) -> (i32, i32) {
    %c0_i32 = arith.constant 0 : i32
    %c0_i32_0 = arith.constant 0 : i32
    %c0_i32_1 = arith.constant 0 : i32
    return %c0_i32, %c0_i32_0 : i32, i32
  }
  func.func @transform_2(%arg0: i32, %arg1: i32) -> (i32, i32) {
    %c0_i32 = arith.constant 0 : i32
    %c0_i32_0 = arith.constant 0 : i32
    %c0_i32_1 = arith.constant 0 : i32
    return %c0_i32, %c0_i32_0 : i32, i32
  }
  func.func @transform_3(%arg0: i32, %arg1: i32) -> (i32, i32) {
    %c0_i32 = arith.constant 0 : i32
    %c0_i32_0 = arith.constant 0 : i32
    return %c0_i32, %arg1 : i32, i32
  }
  func.func @transform_4(%arg0: i32, %arg1: i32) -> (i32, i32) {
    %c0_i32 = arith.constant 0 : i32
    %c0_i32_0 = arith.constant 0 : i32
    return %c0_i32, %arg1 : i32, i32
  }
  func.func @transform_5(%arg0: i32, %arg1: i32) -> (i32, i32) {
    %c0_i32 = arith.constant 0 : i32
    %c0_i32_0 = arith.constant 0 : i32
    return %c0_i32, %arg1 : i32, i32
  }
  func.func @transform_6(%arg0: i32, %arg1: i32) -> (i32, i32) {
    %c0_i32 = arith.constant 0 : i32
    %c0_i32_0 = arith.constant 0 : i32
    return %c0_i32, %arg1 : i32, i32
  }
  func.func @transform_7(%arg0: i32, %arg1: i32) -> (i32, i32) {
    %c0_i32 = arith.constant 0 : i32
    %c0_i32_0 = arith.constant 0 : i32
    return %arg1, %c0_i32 : i32, i32
  }
  func.func @transform_8(%arg0: i32, %arg1: i32) -> (i32, i32) {
    %c0_i32 = arith.constant 0 : i32
    %c0_i32_0 = arith.constant 0 : i32
    %c0_i32_1 = arith.constant 0 : i32
    return %c0_i32, %c0_i32_0 : i32, i32
  }
  func.func @transform_9(%arg0: i32, %arg1: i32) -> (i32, i32) {
    %c0_i32 = arith.constant 0 : i32
    %c0_i32_0 = arith.constant 0 : i32
    return %arg0, %c0_i32 : i32, i32
  }
}

</mosaic_0001>

<llo_original>
// kernel: tpu_custom_call.1
$region0: #{tpu_custom_call.1}
  #allocation0 [shape = 'u32[]', space=smem, size = 0x4, offset = 0x4, fixed_abs, tag = 'smem constant byte address 0x4 - core index']
  #allocation1 [shape = 'u32[72,128]{1,0:T(1,128)}', space=vmem, size = 0x9000, scoped, tag = 'internal scratch']
  #allocation2 [shape = 'f32[48,128]{1,0:T(8,128)}', space=vmem, size = 0x6000, scoped, tag = 'scratch operand']
  #allocation3 [shape = 'f32[48,128]{1,0:T(8,128)}', space=vmem, size = 0x6000, scoped, tag = 'scratch operand']
  %s0 = inlined_call_operand.vmem [shape: f32[48,128], index: 0, kind: input, shape index: {}]
  %s1 = inlined_call_operand.vmem [shape: f32[1,128], index: 1, kind: input, shape index: {}]
  %s2 = inlined_call_operand.vmem [shape: f32[1,128], index: 2, kind: input, shape index: {}]
  %s3 = inlined_call_operand.vmem [shape: f32[128,192], index: 3, kind: input, shape index: {}]
  %s4 = inlined_call_operand.vmem [shape: f32[128,192], index: 4, kind: input, shape index: {}]
  %s5 = inlined_call_operand.vmem [shape: f32[1,192], index: 5, kind: input, shape index: {}]
  %s6 = inlined_call_operand.vmem [shape: f32[1,192], index: 6, kind: input, shape index: {}]
  %s7 = inlined_call_operand.vmem [shape: f32[192,128], index: 7, kind: input, shape index: {}]
  %s8 = inlined_call_operand.vmem [shape: f32[1,128], index: 8, kind: input, shape index: {}]
  %s9 = inlined_call_operand.hbm [shape: f32[48,128], index: 9, kind: output, shape index: {}]
  %s10 = sld [smem:[#allocation0]]
  $region54: #{tpu_custom_call.1} parent=0
    _
  %s12 = ssub.s32 1, %s10
  %s13 = scalar_select 0, %s12, %s10
  $region1: #{tpu_custom_call.1} parent=0
    #allocation4 [shape = 'u8[24576]{0}', space=vmem, size = 0x6000, scoped, tag = 'output window, operand 0, single buffered']
    #allocation5 [shape = 's32[1]{0}', space=sflag, size = 0x4, scoped, tag = 'scoped memory for tpu_custom_call.1']
    %14 = vsyncpa [#allocation5], 0
    // Predicated region
    $region2: #{tpu_custom_call.1} parent=1 // pred_check
      _
    $region3: #{tpu_custom_call.1} parent=1 // pred_check_branch
      %16 = sbr.rel (0) target = $region5
    $region4: #{tpu_custom_call.1} parent=1 // pred_region
      _
    $region5: #{tpu_custom_call.1} parent=1 // pred_fallthru
      _
    // Predicated region
    $region6: #{tpu_custom_call.1} parent=1 // pred_check
      _
    $region7: #{tpu_custom_call.1} parent=1 // pred_check_branch
      %18 = sbr.rel (0) target = $region9
    $region8: #{tpu_custom_call.1} parent=1 // pred_region
      _
    $region9: #{tpu_custom_call.1} parent=1 // pred_fallthru
      _
    // Predicated region
    $region10: #{tpu_custom_call.1} parent=1 // pred_check
      _
    $region11: #{tpu_custom_call.1} parent=1 // pred_check_branch
      %20 = sbr.rel (0) target = $region13
    $region12: #{tpu_custom_call.1} parent=1 // pred_region
      _
    $region13: #{tpu_custom_call.1} parent=1 // pred_fallthru
      _
    // Predicated region
    $region14: #{tpu_custom_call.1} parent=1 // pred_check
      _
    $region15: #{tpu_custom_call.1} parent=1 // pred_check_branch
      %22 = sbr.rel (0) target = $region17
    $region16: #{tpu_custom_call.1} parent=1 // pred_region
      _
    $region17: #{tpu_custom_call.1} parent=1 // pred_fallthru
      _
    // Predicated region
    $region18: #{tpu_custom_call.1} parent=1 // pred_check
      _
    $region19: #{tpu_custom_call.1} parent=1 // pred_check_branch
      %24 = sbr.rel (0) target = $region21
    $region20: #{tpu_custom_call.1} parent=1 // pred_region
      _
    $region21: #{tpu_custom_call.1} parent=1 // pred_fallthru
      _
    // Predicated region
    $region22: #{tpu_custom_call.1} parent=1 // pred_check
      _
    $region23: #{tpu_custom_call.1} parent=1 // pred_check_branch
      %26 = sbr.rel (0) target = $region25
    $region24: #{tpu_custom_call.1} parent=1 // pred_region
      _
    $region25: #{tpu_custom_call.1} parent=1 // pred_fallthru
      _
    // Predicated region
    $region26: #{tpu_custom_call.1} parent=1 // pred_check
      _
    $region27: #{tpu_custom_call.1} parent=1 // pred_check_branch
      %28 = sbr.rel (0) target = $region29
    $region28: #{tpu_custom_call.1} parent=1 // pred_region
      _
    $region29: #{tpu_custom_call.1} parent=1 // pred_fallthru
      _
    // Predicated region
    $region30: #{tpu_custom_call.1} parent=1 // pred_check
      _
    $region31: #{tpu_custom_call.1} parent=1 // pred_check_branch
      %30 = sbr.rel (0) target = $region33
    $region32: #{tpu_custom_call.1} parent=1 // pred_region
      _
    $region33: #{tpu_custom_call.1} parent=1 // pred_fallthru
      _
    // Predicated region
    $region34: #{tpu_custom_call.1} parent=1 // pred_check
      _
    $region35: #{tpu_custom_call.1} parent=1 // pred_check_branch
      %32 = sbr.rel (0) target = $region37
    $region36: #{tpu_custom_call.1} parent=1 // pred_region
      _
    $region37: #{tpu_custom_call.1} parent=1 // pred_fallthru
      _
    %p33 = scmp.eq.s32.totalorder 0, 0
    // Predicated region
    $region38: #{tpu_custom_call.1} parent=1 // pred_check
      %p34 = pneg %p33
    $region39: #{tpu_custom_call.1} parent=1 // pred_check_branch
      %36 = sbr.rel (%p34) target = $region41
    $region40: #{tpu_custom_call.1} parent=1 // pred_region
      %v37 = vld [vmem:[%s0] sm:$0xff]
      %v38 = vld [vmem:[%s0 + $0x8] sm:$0xff]
      %v39 = vld [vmem:[%s0 + $0x10] sm:$0xff]
      %v40 = vld [vmem:[%s0 + $0x18] sm:$0xff]
      %v41 = vld [vmem:[%s0 + $0x20] sm:$0xff]
      %v42 = vld [vmem:[%s0 + $0x28] sm:$0xff]
      %43 = vadd.xlane.f32.xlu0 %v37
      %v44 = vpop.xlane.xlu0 %43
      %45 = vadd.xlane.f32.xlu0 %v38
      %v46 = vpop.xlane.xlu0 %45
      %47 = vadd.xlane.f32.xlu0 %v39
      %v48 = vpop.xlane.xlu0 %47
      %49 = vadd.xlane.f32.xlu0 %v40
      %v50 = vpop.xlane.xlu0 %49
      %51 = vadd.xlane.f32.xlu0 %v41
      %v52 = vpop.xlane.xlu0 %51
      %53 = vadd.xlane.f32.xlu0 %v42
      %v54 = vpop.xlane.xlu0 %53
      %v55 = vrcp.pop 128.0
      %v56 = vmul.f32 128.0, %v55
      %v57 = vsub.f32 1.0, %v56
      %v58 = vmul.f32 %v55, %v57
      %v59 = vadd.f32 %v55, %v58
      %vm60 = vweird.f32 %v55
      %v61 = vsel %vm60, %v55, %v59
      %v62 = vmul.f32 %v44, %v61
      %v63 = vmul.f32 %v46, %v61
      %v64 = vmul.f32 %v48, %v61
      %v65 = vmul.f32 %v50, %v61
      %v66 = vmul.f32 %v52, %v61
      %v67 = vmul.f32 %v54, %v61
      %v68 = vsub.f32 %v37, %v62
      %v69 = vsub.f32 %v38, %v63
      %v70 = vsub.f32 %v39, %v64
      %v71 = vsub.f32 %v40, %v65
      %v72 = vsub.f32 %v41, %v66
      %v73 = vsub.f32 %v42, %v67
      %v74 = vmul.f32 %v68, %v68
      %v75 = vmul.f32 %v69, %v69
      %v76 = vmul.f32 %v70, %v70
      %v77 = vmul.f32 %v71, %v71
      %v78 = vmul.f32 %v72, %v72
      %v79 = vmul.f32 %v73, %v73
      %80 = vadd.xlane.f32.xlu0 %v74
      %v81 = vpop.xlane.xlu0 %80
      %82 = vadd.xlane.f32.xlu0 %v75
      %v83 = vpop.xlane.xlu0 %82
      %84 = vadd.xlane.f32.xlu0 %v76
      %v85 = vpop.xlane.xlu0 %84
      %86 = vadd.xlane.f32.xlu0 %v77
      %v87 = vpop.xlane.xlu0 %86
      %88 = vadd.xlane.f32.xlu0 %v78
      %v89 = vpop.xlane.xlu0 %88
      %90 = vadd.xlane.f32.xlu0 %v79
      %v91 = vpop.xlane.xlu0 %90
      %v92 = vmul.f32 %v81, %v61
      %v93 = vmul.f32 %v83, %v61
      %v94 = vmul.f32 %v85, %v61
      %v95 = vmul.f32 %v87, %v61
      %v96 = vmul.f32 %v89, %v61
      %v97 = vmul.f32 %v91, %v61
      %v98 = vadd.f32 %v92, 1e-05
      %v99 = vadd.f32 %v93, 1e-05
      %v100 = vadd.f32 %v94, 1e-05
      %v101 = vadd.f32 %v95, 1e-05
      %v102 = vadd.f32 %v96, 1e-05
      %v103 = vadd.f32 %v97, 1e-05
      %v104 = vrsqrt.pop %v98
      %v105 = vmul.f32 %v104, %v98
      %v106 = vmul.f32 %v105, %v104
      %v107 = vmul.f32 0.5, %v106
      %v108 = vsub.f32 1.5, %v107
      %v109 = vmul.f32 %v104, %v108
      %vm110 = vweird.f32 %v98
      %vm111 = vweird.f32 %v104
      %vm112 = vmor %vm110, %vm111
      %v113 = vsel %vm112, %v104, %v109
      %v114 = vrsqrt.pop %v99
      %v115 = vmul.f32 %v114, %v99
      %v116 = vmul.f32 %v115, %v114
      %v117 = vmul.f32 0.5, %v116
      %v118 = vsub.f32 1.5, %v117
      %v119 = vmul.f32 %v114, %v118
      %vm120 = vweird.f32 %v99
      %vm121 = vweird.f32 %v114
      %vm122 = vmor %vm120, %vm121
      %v123 = vsel %vm122, %v114, %v119
      %v124 = vrsqrt.pop %v100
      %v125 = vmul.f32 %v124, %v100
      %v126 = vmul.f32 %v125, %v124
      %v127 = vmul.f32 0.5, %v126
      %v128 = vsub.f32 1.5, %v127
      %v129 = vmul.f32 %v124, %v128
      %vm130 = vweird.f32 %v100
      %vm131 = vweird.f32 %v124
      %vm132 = vmor %vm130, %vm131
      %v133 = vsel %vm132, %v124, %v129
      %v134 = vrsqrt.pop %v101
      %v135 = vmul.f32 %v134, %v101
      %v136 = vmul.f32 %v135, %v134
      %v137 = vmul.f32 0.5, %v136
      %v138 = vsub.f32 1.5, %v137
      %v139 = vmul.f32 %v134, %v138
      %vm140 = vweird.f32 %v101
      %vm141 = vweird.f32 %v134
      %vm142 = vmor %vm140, %vm141
      %v143 = vsel %vm142, %v134, %v139
      %v144 = vrsqrt.pop %v102
      %v145 = vmul.f32 %v144, %v102
      %v146 = vmul.f32 %v145, %v144
      %v147 = vmul.f32 0.5, %v146
      %v148 = vsub.f32 1.5, %v147
      %v149 = vmul.f32 %v144, %v148
      %vm150 = vweird.f32 %v102
      %vm151 = vweird.f32 %v144
      %vm152 = vmor %vm150, %vm151
      %v153 = vsel %vm152, %v144, %v149
      %v154 = vrsqrt.pop %v103
      %v155 = vmul.f32 %v154, %v103
      %v156 = vmul.f32 %v155, %v154
      %v157 = vmul.f32 0.5, %v156
      %v158 = vsub.f32 1.5, %v157
      %v159 = vmul.f32 %v154, %v158
      %vm160 = vweird.f32 %v103
      %vm161 = vweird.f32 %v154
      %vm162 = vmor %vm160, %vm161
      %v163 = vsel %vm162, %v154, %v159
      %v164 = vmul.f32 %v68, %v113
      %v165 = vmul.f32 %v69, %v123
      %v166 = vmul.f32 %v70, %v133
      %v167 = vmul.f32 %v71, %v143
      %v168 = vmul.f32 %v72, %v153
      %v169 = vmul.f32 %v73, %v163
      %v170 = vld [vmem:[%s1] sm:$0x1]
      %v172 = vperm.slane %v170, 0
      %v174 = vmul.f32 %v164, %v172
      %v175 = vmul.f32 %v165, %v172
      %v176 = vmul.f32 %v166, %v172
      %v177 = vmul.f32 %v167, %v172
      %v178 = vmul.f32 %v168, %v172
      %v179 = vmul.f32 %v169, %v172
      %v180 = vld [vmem:[%s2] sm:$0x1]
      %v182 = vperm.slane %v180, 0
      %v184 = vadd.f32 %v174, %v182
      %v185 = vadd.f32 %v175, %v182
      %v186 = vadd.f32 %v176, %v182
      %v187 = vadd.f32 %v177, %v182
      %v188 = vadd.f32 %v178, %v182
      %v189 = vadd.f32 %v179, %v182
      %190 = vst [vmem:[#allocation2] sm:$0xff] %v184
      %191 = vst [vmem:[#allocation2 + $0x8] sm:$0xff] %v185
      %192 = vst [vmem:[#allocation2 + $0x10] sm:$0xff] %v186
      %193 = vst [vmem:[#allocation2 + $0x18] sm:$0xff] %v187
      %194 = vst [vmem:[#allocation2 + $0x20] sm:$0xff] %v188
      %195 = vst [vmem:[#allocation2 + $0x28] sm:$0xff] %v189
      %196 = vst [vmem:[#allocation3] sm:$0xff] 0.0
      %197 = vst [vmem:[#allocation3 + $0x8] sm:$0xff] 0.0
      %198 = vst [vmem:[#allocation3 + $0x10] sm:$0xff] 0.0
      %199 = vst [vmem:[#allocation3 + $0x18] sm:$0xff] 0.0
      %200 = vst [vmem:[#allocation3 + $0x20] sm:$0xff] 0.0
      %201 = vst [vmem:[#allocation3 + $0x28] sm:$0xff] 0.0
    $region41: #{tpu_custom_call.1} parent=1 // pred_fallthru
      _
    %v202 = vld [vmem:[#allocation2] sm:$0xff]
    %v203 = vld [vmem:[#allocation2 + $0x8] sm:$0xff]
    %v204 = vld [vmem:[#allocation2 + $0x10] sm:$0xff]
    %v205 = vld [vmem:[#allocation2 + $0x18] sm:$0xff]
    %v206 = vld [vmem:[#allocation2 + $0x20] sm:$0xff]
    %v207 = vld [vmem:[#allocation2 + $0x28] sm:$0xff]
    %v208 = vld [vmem:[%s3] sm:$0xff]
    %v209 = vld [vmem:[%s3 + $0x8] sm:$0xff]
    %v210 = vld [vmem:[%s3 + $0x10] sm:$0xff]
    %v211 = vld [vmem:[%s3 + $0x18] sm:$0xff]
    %v212 = vld [vmem:[%s3 + $0x20] sm:$0xff]
    %v213 = vld [vmem:[%s3 + $0x28] sm:$0xff]
    %v214 = vld [vmem:[%s3 + $0x30] sm:$0xff]
    %v215 = vld [vmem:[%s3 + $0x38] sm:$0xff]
    %v216 = vld [vmem:[%s3 + $0x40] sm:$0xff]
    %v217 = vld [vmem:[%s3 + $0x48] sm:$0xff]
    %v218 = vld [vmem:[%s3 + $0x50] sm:$0xff]
    %v219 = vld [vmem:[%s3 + $0x58] sm:$0xff]
    %v220 = vld [vmem:[%s3 + $0x60] sm:$0xff]
    %v221 = vld [vmem:[%s3 + $0x68] sm:$0xff]
    %v222 = vld [vmem:[%s3 + $0x70] sm:$0xff]
    %v223 = vld [vmem:[%s3 + $0x78] sm:$0xff]
    %v224 = vld [vmem:[%s3 + $0x80] sm:$0xff]
    %v225 = vld [vmem:[%s3 + $0x88] sm:$0xff]
    %v226 = vld [vmem:[%s3 + $0x90] sm:$0xff]
    %v227 = vld [vmem:[%s3 + $0x98] sm:$0xff]
    %v228 = vld [vmem:[%s3 + $0xa0] sm:$0xff]
    %v229 = vld [vmem:[%s3 + $0xa8] sm:$0xff]
    %v230 = vld [vmem:[%s3 + $0xb0] sm:$0xff]
    %v231 = vld [vmem:[%s3 + $0xb8] sm:$0xff]
    %v232 = vld [vmem:[%s3 + $0xc0] sm:$0xff]
    %v233 = vld [vmem:[%s3 + $0xc8] sm:$0xff]
    %v234 = vld [vmem:[%s3 + $0xd0] sm:$0xff]
    %v235 = vld [vmem:[%s3 + $0xd8] sm:$0xff]
    %v236 = vld [vmem:[%s3 + $0xe0] sm:$0xff]
    %v237 = vld [vmem:[%s3 + $0xe8] sm:$0xff]
    %v238 = vld [vmem:[%s3 + $0xf0] sm:$0xff]
    %v239 = vld [vmem:[%s3 + $0xf8] sm:$0xff]
    %v240 = vld [vmem:[%s5] sm:$0x3]
    %v242 = vperm.slane %v240, 0
    %v243 = vperm.slane %v240, 1
    %246 = vmatpush.msra.mxu0 %v238
    %247 = vmatpush.msra.mxu0 %v236
    %248 = vmatpush.msra.mxu0 %v234
    %249 = vmatpush.msra.mxu0 %v232
    %250 = vmatpush.msra.mxu0 %v230
    %251 = vmatpush.msra.mxu0 %v228
    %252 = vmatpush.msra.mxu0 %v226
    %253 = vmatpush.msra.mxu0 %v224
    %254 = vmatpush.msra.mxu0 %v222
    %255 = vmatpush.msra.mxu0 %v220
    %256 = vmatpush.msra.mxu0 %v218
    %257 = vmatpush.msra.mxu0 %v216
    %258 = vmatpush.msra.mxu0 %v214
    %259 = vmatpush.msra.mxu0 %v212
    %260 = vmatpush.msra.mxu0 %v210
    %261 = vmatpush.msra.mxu0 %v208
    %262 = vmatmul.f32.gmra.mxu0 %v202
    %v263 = vpop.f32.mrf.mxu0
    %v264 = vadd.f32 %v242, %v263
    %265 = vmatmul.f32.gmra.mxu0 %v203
    %v266 = vpop.f32.mrf.mxu0
    %v267 = vadd.f32 %v242, %v266
    %268 = vmatmul.f32.gmra.mxu0 %v204
    %v269 = vpop.f32.mrf.mxu0
    %v270 = vadd.f32 %v242, %v269
    %271 = vmatmul.f32.gmra.mxu0 %v205
    %v272 = vpop.f32.mrf.mxu0
    %v273 = vadd.f32 %v242, %v272
    %274 = vmatmul.f32.gmra.mxu0 %v206
    %v275 = vpop.f32.mrf.mxu0
    %v276 = vadd.f32 %v242, %v275
    %277 = vmatmul.f32.gmra.mxu0 %v207
    %v278 = vpop.f32.mrf.mxu0
    %v279 = vadd.f32 %v242, %v278
    %280 = vdwg.mxu0
    %281 = vmatpush.msra.mxu0 %v239
    %282 = vmatpush.msra.mxu0 %v237
    %283 = vmatpush.msra.mxu0 %v235
    %284 = vmatpush.msra.mxu0 %v233
    %285 = vmatpush.msra.mxu0 %v231
    %286 = vmatpush.msra.mxu0 %v229
    %287 = vmatpush.msra.mxu0 %v227
    %288 = vmatpush.msra.mxu0 %v225
    %289 = vmatpush.msra.mxu0 %v223
    %290 = vmatpush.msra.mxu0 %v221
    %291 = vmatpush.msra.mxu0 %v219
    %292 = vmatpush.msra.mxu0 %v217
    %293 = vmatpush.msra.mxu0 %v215
    %294 = vmatpush.msra.mxu0 %v213
    %295 = vmatpush.msra.mxu0 %v211
    %296 = vmatpush.msra.mxu0 %v209
    %297 = vmatmul.f32.gmra.mxu0 %v202
    %v298 = vpop.f32.mrf.mxu0
    %v299 = vadd.f32 %v243, %v298
    %300 = vmatmul.f32.gmra.mxu0 %v203
    %v301 = vpop.f32.mrf.mxu0
    %v302 = vadd.f32 %v243, %v301
    %303 = vmatmul.f32.gmra.mxu0 %v204
    %v304 = vpop.f32.mrf.mxu0
    %v305 = vadd.f32 %v243, %v304
    %306 = vmatmul.f32.gmra.mxu0 %v205
    %v307 = vpop.f32.mrf.mxu0
    %v308 = vadd.f32 %v243, %v307
    %309 = vmatmul.f32.gmra.mxu0 %v206
    %v310 = vpop.f32.mrf.mxu0
    %v311 = vadd.f32 %v243, %v310
    %312 = vmatmul.f32.gmra.mxu0 %v207
    %v313 = vpop.f32.mrf.mxu0
    %v314 = vadd.f32 %v243, %v313
    %315 = vdwg.mxu0
    %v316 = vld [vmem:[%s4] sm:$0xff]
    %v317 = vld [vmem:[%s4 + $0x8] sm:$0xff]
    %v318 = vld [vmem:[%s4 + $0x10] sm:$0xff]
    %v319 = vld [vmem:[%s4 + $0x18] sm:$0xff]
    %v320 = vld [vmem:[%s4 + $0x20] sm:$0xff]
    %v321 = vld [vmem:[%s4 + $0x28] sm:$0xff]
    %v322 = vld [vmem:[%s4 + $0x30] sm:$0xff]
    %v323 = vld [vmem:[%s4 + $0x38] sm:$0xff]
    %v324 = vld [vmem:[%s4 + $0x40] sm:$0xff]
    %v325 = vld [vmem:[%s4 + $0x48] sm:$0xff]
    %v326 = vld [vmem:[%s4 + $0x50] sm:$0xff]
    %v327 = vld [vmem:[%s4 + $0x58] sm:$0xff]
    %v328 = vld [vmem:[%s4 + $0x60] sm:$0xff]
    %v329 = vld [vmem:[%s4 + $0x68] sm:$0xff]
    %v330 = vld [vmem:[%s4 + $0x70] sm:$0xff]
    %v331 = vld [vmem:[%s4 + $0x78] sm:$0xff]
    %v332 = vld [vmem:[%s4 + $0x80] sm:$0xff]
    %v333 = vld [vmem:[%s4 + $0x88] sm:$0xff]
    %v334 = vld [vmem:[%s4 + $0x90] sm:$0xff]
    %v335 = vld [vmem:[%s4 + $0x98] sm:$0xff]
    %v336 = vld [vmem:[%s4 + $0xa0] sm:$0xff]
    %v337 = vld [vmem:[%s4 + $0xa8] sm:$0xff]
    %v338 = vld [vmem:[%s4 + $0xb0] sm:$0xff]
    %v339 = vld [vmem:[%s4 + $0xb8] sm:$0xff]
    %v340 = vld [vmem:[%s4 + $0xc0] sm:$0xff]
    %v341 = vld [vmem:[%s4 + $0xc8] sm:$0xff]
    %v342 = vld [vmem:[%s4 + $0xd0] sm:$0xff]
    %v343 = vld [vmem:[%s4 + $0xd8] sm:$0xff]
    %v344 = vld [vmem:[%s4 + $0xe0] sm:$0xff]
    %v345 = vld [vmem:[%s4 + $0xe8] sm:$0xff]
    %v346 = vld [vmem:[%s4 + $0xf0] sm:$0xff]
    %v347 = vld [vmem:[%s4 + $0xf8] sm:$0xff]
    %v348 = vld [vmem:[%s6] sm:$0x3]
    %v350 = vperm.slane %v348, 0
    %v351 = vperm.slane %v348, 1
    %354 = vmatpush.msra.mxu0 %v346
    %355 = vmatpush.msra.mxu0 %v344
    %356 = vmatpush.msra.mxu0 %v342
    %357 = vmatpush.msra.mxu0 %v340
    %358 = vmatpush.msra.mxu0 %v338
    %359 = vmatpush.msra.mxu0 %v336
    %360 = vmatpush.msra.mxu0 %v334
    %361 = vmatpush.msra.mxu0 %v332
    %362 = vmatpush.msra.mxu0 %v330
    %363 = vmatpush.msra.mxu0 %v328
    %364 = vmatpush.msra.mxu0 %v326
    %365 = vmatpush.msra.mxu0 %v324
    %366 = vmatpush.msra.mxu0 %v322
    %367 = vmatpush.msra.mxu0 %v320
    %368 = vmatpush.msra.mxu0 %v318
    %369 = vmatpush.msra.mxu0 %v316
    %370 = vmatmul.f32.gmra.mxu0 %v202
    %v371 = vpop.f32.mrf.mxu0
    %v372 = vadd.f32 %v350, %v371
    %373 = vmatmul.f32.gmra.mxu0 %v203
    %v374 = vpop.f32.mrf.mxu0
    %v375 = vadd.f32 %v350, %v374
    %376 = vmatmul.f32.gmra.mxu0 %v204
    %v377 = vpop.f32.mrf.mxu0
    %v378 = vadd.f32 %v350, %v377
    %379 = vmatmul.f32.gmra.mxu0 %v205
    %v380 = vpop.f32.mrf.mxu0
    %v381 = vadd.f32 %v350, %v380
    %382 = vmatmul.f32.gmra.mxu0 %v206
    %v383 = vpop.f32.mrf.mxu0
    %v384 = vadd.f32 %v350, %v383
    %385 = vmatmul.f32.gmra.mxu0 %v207
    %v386 = vpop.f32.mrf.mxu0
    %v387 = vadd.f32 %v350, %v386
    %388 = vdwg.mxu0
    %389 = vmatpush.msra.mxu0 %v347
    %390 = vmatpush.msra.mxu0 %v345
    %391 = vmatpush.msra.mxu0 %v343
    %392 = vmatpush.msra.mxu0 %v341
    %393 = vmatpush.msra.mxu0 %v339
    %394 = vmatpush.msra.mxu0 %v337
    %395 = vmatpush.msra.mxu0 %v335
    %396 = vmatpush.msra.mxu0 %v333
    %397 = vmatpush.msra.mxu0 %v331
    %398 = vmatpush.msra.mxu0 %v329
    %399 = vmatpush.msra.mxu0 %v327
    %400 = vmatpush.msra.mxu0 %v325
    %401 = vmatpush.msra.mxu0 %v323
    %402 = vmatpush.msra.mxu0 %v321
    %403 = vmatpush.msra.mxu0 %v319
    %404 = vmatpush.msra.mxu0 %v317
    %405 = vmatmul.f32.gmra.mxu0 %v202
    %v406 = vpop.f32.mrf.mxu0
    %v407 = vadd.f32 %v351, %v406
    %408 = vmatmul.f32.gmra.mxu0 %v203
    %v409 = vpop.f32.mrf.mxu0
    %v410 = vadd.f32 %v351, %v409
    %411 = vmatmul.f32.gmra.mxu0 %v204
    %v412 = vpop.f32.mrf.mxu0
    %v413 = vadd.f32 %v351, %v412
    %414 = vmatmul.f32.gmra.mxu0 %v205
    %v415 = vpop.f32.mrf.mxu0
    %v416 = vadd.f32 %v351, %v415
    %417 = vmatmul.f32.gmra.mxu0 %v206
    %v418 = vpop.f32.mrf.mxu0
    %v419 = vadd.f32 %v351, %v418
    %420 = vmatmul.f32.gmra.mxu0 %v207
    %v421 = vpop.f32.mrf.mxu0
    %v422 = vadd.f32 %v351, %v421
    %423 = vdwg.mxu0
    %v424 = vmul.f32 %v372, 0.5
    %v425 = vmul.f32 %v407, 0.5
    %v426 = vmul.f32 %v375, 0.5
    %v427 = vmul.f32 %v410, 0.5
    %v428 = vmul.f32 %v378, 0.5
    %v429 = vmul.f32 %v413, 0.5
    %v430 = vmul.f32 %v381, 0.5
    %v431 = vmul.f32 %v416, 0.5
    %v432 = vmul.f32 %v384, 0.5
    %v433 = vmul.f32 %v419, 0.5
    %v434 = vmul.f32 %v387, 0.5
    %v435 = vmul.f32 %v422, 0.5
    %v436 = vmul.f32 %v372, 0.70710677
    %v437 = vmul.f32 %v407, 0.70710677
    %v438 = vmul.f32 %v375, 0.70710677
    %v439 = vmul.f32 %v410, 0.70710677
    %v440 = vmul.f32 %v378, 0.70710677
    %v441 = vmul.f32 %v413, 0.70710677
    %v442 = vmul.f32 %v381, 0.70710677
    %v443 = vmul.f32 %v416, 0.70710677
    %v444 = vmul.f32 %v384, 0.70710677
    %v445 = vmul.f32 %v419, 0.70710677
    %v446 = vmul.f32 %v387, 0.70710677
    %v447 = vmul.f32 %v422, 0.70710677
    %v448 = vmul.f32 %v436, %v436
    %v449 = vmin.f32 16.0, %v448
    %v450 = vmul.f32 %v449, 2.1237322e-06
    %v451 = vadd.f32 %v450, 0.00028619796
    %v452 = vmul.f32 %v449, %v451
    %v453 = vadd.f32 %v452, 0.0036580483
    %v454 = vmul.f32 %v449, %v453
    %v455 = vadd.f32 %v454, 0.05243302
    %v456 = vmul.f32 %v449, %v455
    %v457 = vadd.f32 %v456, 0.18741608
    %v458 = vmul.f32 %v449, %v457
    %v459 = vadd.f32 %v458, 1.1283791
    %v460 = vmul.f32 %v436, %v459
    %v461 = vmul.f32 %v449, 3.8918573e-05
    %v462 = vadd.f32 %v461, 0.001143296
    %v463 = vmul.f32 %v449, %v462
    %v464 = vadd.f32 %v463, 0.014752088
    %v465 = vmul.f32 %v449, %v464
    %v466 = vadd.f32 %v465, 0.112945676
    %v467 = vmul.f32 %v449, %v466
    %v468 = vadd.f32 %v467, 0.4994258
    %v469 = vmul.f32 %v449, %v468
    %v470 = vadd.f32 %v469, 1.0
    %v471 = vrcp.pop %v470
    %v472 = vmul.f32 %v470, %v471
    %v473 = vsub.f32 1.0, %v472
    %v474 = vmul.f32 %v471, %v473
    %v475 = vadd.f32 %v471, %v474
    %vm476 = vweird.f32 %v470
    %vm477 = vweird.f32 %v471
    %vm478 = vmor %vm476, %vm477
    %v479 = vsel %vm478, %v471, %v475
    %v480 = vand.u32 2147483647, %v470
    %vm481 = vcmp.eq.f32.partialorder %v480, 8.507059e+37
    %v482 = vand.u32 %v470, 2147483648
    %v483 = vor.u32 1.1754944e-38, %v482
    %v484 = vsel %vm481, %v483, %v479
    %v485 = vmul.f32 %v460, %v484
    %v486 = vmin.f32 %v485, 1.0
    %v487 = vmax.f32 %v486, -1.0
    %v488 = vmul.f32 %v437, %v437
    %v489 = vmin.f32 16.0, %v488
    %v490 = vmul.f32 %v489, 2.1237322e-06
    %v491 = vadd.f32 %v490, 0.00028619796
    %v492 = vmul.f32 %v489, %v491
    %v493 = vadd.f32 %v492, 0.0036580483
    %v494 = vmul.f32 %v489, %v493
    %v495 = vadd.f32 %v494, 0.05243302
    %v496 = vmul.f32 %v489, %v495
    %v497 = vadd.f32 %v496, 0.18741608
    %v498 = vmul.f32 %v489, %v497
    %v499 = vadd.f32 %v498, 1.1283791
    %v500 = vmul.f32 %v437, %v499
    %v501 = vmul.f32 %v489, 3.8918573e-05
    %v502 = vadd.f32 %v501, 0.001143296
    %v503 = vmul.f32 %v489, %v502
    %v504 = vadd.f32 %v503, 0.014752088
    %v505 = vmul.f32 %v489, %v504
    %v506 = vadd.f32 %v505, 0.112945676
    %v507 = vmul.f32 %v489, %v506
    %v508 = vadd.f32 %v507, 0.4994258
    %v509 = vmul.f32 %v489, %v508
    %v510 = vadd.f32 %v509, 1.0
    %v511 = vrcp.pop %v510
    %v512 = vmul.f32 %v510, %v511
    %v513 = vsub.f32 1.0, %v512
    %v514 = vmul.f32 %v511, %v513
    %v515 = vadd.f32 %v511, %v514
    %vm516 = vweird.f32 %v510
    %vm517 = vweird.f32 %v511
    %vm518 = vmor %vm516, %vm517
    %v519 = vsel %vm518, %v511, %v515
    %v520 = vand.u32 2147483647, %v510
    %vm521 = vcmp.eq.f32.partialorder %v520, 8.507059e+37
    %v522 = vand.u32 %v510, 2147483648
    %v523 = vor.u32 1.1754944e-38, %v522
    %v524 = vsel %vm521, %v523, %v519
    %v525 = vmul.f32 %v500, %v524
    %v526 = vmin.f32 %v525, 1.0
    %v527 = vmax.f32 %v526, -1.0
    %v528 = vmul.f32 %v438, %v438
    %v529 = vmin.f32 16.0, %v528
    %v530 = vmul.f32 %v529, 2.1237322e-06
    %v531 = vadd.f32 %v530, 0.00028619796
    %v532 = vmul.f32 %v529, %v531
    %v533 = vadd.f32 %v532, 0.0036580483
    %v534 = vmul.f32 %v529, %v533
    %v535 = vadd.f32 %v534, 0.05243302
    %v536 = vmul.f32 %v529, %v535
    %v537 = vadd.f32 %v536, 0.18741608
    %v538 = vmul.f32 %v529, %v537
    %v539 = vadd.f32 %v538, 1.1283791
    %v540 = vmul.f32 %v438, %v539
    %v541 = vmul.f32 %v529, 3.8918573e-05
    %v542 = vadd.f32 %v541, 0.001143296
    %v543 = vmul.f32 %v529, %v542
    %v544 = vadd.f32 %v543, 0.014752088
    %v545 = vmul.f32 %v529, %v544
    %v546 = vadd.f32 %v545, 0.112945676
    %v547 = vmul.f32 %v529, %v546
    %v548 = vadd.f32 %v547, 0.4994258
    %v549 = vmul.f32 %v529, %v548
    %v550 = vadd.f32 %v549, 1.0
    %v551 = vrcp.pop %v550
    %v552 = vmul.f32 %v550, %v551
    %v553 = vsub.f32 1.0, %v552
    %v554 = vmul.f32 %v551, %v553
    %v555 = vadd.f32 %v551, %v554
    %vm556 = vweird.f32 %v550
    %vm557 = vweird.f32 %v551
    %vm558 = vmor %vm556, %vm557
    %v559 = vsel %vm558, %v551, %v555
    %v560 = vand.u32 2147483647, %v550
    %vm561 = vcmp.eq.f32.partialorder %v560, 8.507059e+37
    %v562 = vand.u32 %v550, 2147483648
    %v563 = vor.u32 1.1754944e-38, %v562
    %v564 = vsel %vm561, %v563, %v559
    %v565 = vmul.f32 %v540, %v564
    %v566 = vmin.f32 %v565, 1.0
    %v567 = vmax.f32 %v566, -1.0
    %v568 = vmul.f32 %v439, %v439
    %v569 = vmin.f32 16.0, %v568
    %v570 = vmul.f32 %v569, 2.1237322e-06
    %v571 = vadd.f32 %v570, 0.00028619796
    %v572 = vmul.f32 %v569, %v571
    %v573 = vadd.f32 %v572, 0.0036580483
    %v574 = vmul.f32 %v569, %v573
    %v575 = vadd.f32 %v574, 0.05243302
    %v576 = vmul.f32 %v569, %v575
    %v577 = vadd.f32 %v576, 0.18741608
    %v578 = vmul.f32 %v569, %v577
    %v579 = vadd.f32 %v578, 1.1283791
    %v580 = vmul.f32 %v439, %v579
    %v581 = vmul.f32 %v569, 3.8918573e-05
    %v582 = vadd.f32 %v581, 0.001143296
    %v583 = vmul.f32 %v569, %v582
    %v584 = vadd.f32 %v583, 0.014752088
    %v585 = vmul.f32 %v569, %v584
    %v586 = vadd.f32 %v585, 0.112945676
    %v587 = vmul.f32 %v569, %v586
    %v588 = vadd.f32 %v587, 0.4994258
    %v589 = vmul.f32 %v569, %v588
    %v590 = vadd.f32 %v589, 1.0
    %v591 = vrcp.pop %v590
    %v592 = vmul.f32 %v590, %v591
    %v593 = vsub.f32 1.0, %v592
    %v594 = vmul.f32 %v591, %v593
    %v595 = vadd.f32 %v591, %v594
    %vm596 = vweird.f32 %v590
    %vm597 = vweird.f32 %v591
    %vm598 = vmor %vm596, %vm597
    %v599 = vsel %vm598, %v591, %v595
    %v600 = vand.u32 2147483647, %v590
    %vm601 = vcmp.eq.f32.partialorder %v600, 8.507059e+37
    %v602 = vand.u32 %v590, 2147483648
    %v603 = vor.u32 1.1754944e-38, %v602
    %v604 = vsel %vm601, %v603, %v599
    %v605 = vmul.f32 %v580, %v604
    %v606 = vmin.f32 %v605, 1.0
    %v607 = vmax.f32 %v606, -1.0
    %v608 = vmul.f32 %v440, %v440
    %v609 = vmin.f32 16.0, %v608
    %v610 = vmul.f32 %v609, 2.1237322e-06
    %v611 = vadd.f32 %v610, 0.00028619796
    %v612 = vmul.f32 %v609, %v611
    %v613 = vadd.f32 %v612, 0.0036580483
    %v614 = vmul.f32 %v609, %v613
    %v615 = vadd.f32 %v614, 0.05243302
    %v616 = vmul.f32 %v609, %v615
    %v617 = vadd.f32 %v616, 0.18741608
    %v618 = vmul.f32 %v609, %v617
    %v619 = vadd.f32 %v618, 1.1283791
    %v620 = vmul.f32 %v440, %v619
    %v621 = vmul.f32 %v609, 3.8918573e-05
    %v622 = vadd.f32 %v621, 0.001143296
    %v623 = vmul.f32 %v609, %v622
    %v624 = vadd.f32 %v623, 0.014752088
    %v625 = vmul.f32 %v609, %v624
    %v626 = vadd.f32 %v625, 0.112945676
    %v627 = vmul.f32 %v609, %v626
    %v628 = vadd.f32 %v627, 0.4994258
    %v629 = vmul.f32 %v609, %v628
    %v630 = vadd.f32 %v629, 1.0
    %v631 = vrcp.pop %v630
    %v632 = vmul.f32 %v630, %v631
    %v633 = vsub.f32 1.0, %v632
    %v634 = vmul.f32 %v631, %v633
    %v635 = vadd.f32 %v631, %v634
    %vm636 = vweird.f32 %v630
    %vm637 = vweird.f32 %v631
    %vm638 = vmor %vm636, %vm637
    %v639 = vsel %vm638, %v631, %v635
    %v640 = vand.u32 2147483647, %v630
    %vm641 = vcmp.eq.f32.partialorder %v640, 8.507059e+37
    %v642 = vand.u32 %v630, 2147483648
    %v643 = vor.u32 1.1754944e-38, %v642
    %v644 = vsel %vm641, %v643, %v639
    %v645 = vmul.f32 %v620, %v644
    %v646 = vmin.f32 %v645, 1.0
    %v647 = vmax.f32 %v646, -1.0
    %v648 = vmul.f32 %v441, %v441
    %v649 = vmin.f32 16.0, %v648
    %v650 = vmul.f32 %v649, 2.1237322e-06
    %v651 = vadd.f32 %v650, 0.00028619796
    %v652 = vmul.f32 %v649, %v651
    %v653 = vadd.f32 %v652, 0.0036580483
    %v654 = vmul.f32 %v649, %v653
    %v655 = vadd.f32 %v654, 0.05243302
    %v656 = vmul.f32 %v649, %v655
    %v657 = vadd.f32 %v656, 0.18741608
    %v658 = vmul.f32 %v649, %v657
    %v659 = vadd.f32 %v658, 1.1283791
    %v660 = vmul.f32 %v441, %v659
    %v661 = vmul.f32 %v649, 3.8918573e-05
    %v662 = vadd.f32 %v661, 0.001143296
    %v663 = vmul.f32 %v649, %v662
    %v664 = vadd.f32 %v663, 0.014752088
    %v665 = vmul.f32 %v649, %v664
    %v666 = vadd.f32 %v665, 0.112945676
    %v667 = vmul.f32 %v649, %v666
    %v668 = vadd.f32 %v667, 0.4994258
    %v669 = vmul.f32 %v649, %v668
    %v670 = vadd.f32 %v669, 1.0
    %v671 = vrcp.pop %v670
    %v672 = vmul.f32 %v670, %v671
    %v673 = vsub.f32 1.0, %v672
    %v674 = vmul.f32 %v671, %v673
    %v675 = vadd.f32 %v671, %v674
    %vm676 = vweird.f32 %v670
    %vm677 = vweird.f32 %v671
    %vm678 = vmor %vm676, %vm677
    %v679 = vsel %vm678, %v671, %v675
    %v680 = vand.u32 2147483647, %v670
    %vm681 = vcmp.eq.f32.partialorder %v680, 8.507059e+37
    %v682 = vand.u32 %v670, 2147483648
    %v683 = vor.u32 1.1754944e-38, %v682
    %v684 = vsel %vm681, %v683, %v679
    %v685 = vmul.f32 %v660, %v684
    %v686 = vmin.f32 %v685, 1.0
    %v687 = vmax.f32 %v686, -1.0
    %v688 = vmul.f32 %v442, %v442
    %v689 = vmin.f32 16.0, %v688
    %v690 = vmul.f32 %v689, 2.1237322e-06
    %v691 = vadd.f32 %v690, 0.00028619796
    %v692 = vmul.f32 %v689, %v691
    %v693 = vadd.f32 %v692, 0.0036580483
    %v694 = vmul.f32 %v689, %v693
    %v695 = vadd.f32 %v694, 0.05243302
    %v696 = vmul.f32 %v689, %v695
    %v697 = vadd.f32 %v696, 0.18741608
    %v698 = vmul.f32 %v689, %v697
    %v699 = vadd.f32 %v698, 1.1283791
    %v700 = vmul.f32 %v442, %v699
    %v701 = vmul.f32 %v689, 3.8918573e-05
    %v702 = vadd.f32 %v701, 0.001143296
    %v703 = vmul.f32 %v689, %v702
    %v704 = vadd.f32 %v703, 0.014752088
    %v705 = vmul.f32 %v689, %v704
    %v706 = vadd.f32 %v705, 0.112945676
    %v707 = vmul.f32 %v689, %v706
    %v708 = vadd.f32 %v707, 0.4994258
    %v709 = vmul.f32 %v689, %v708
    %v710 = vadd.f32 %v709, 1.0
    %v711 = vrcp.pop %v710
    %v712 = vmul.f32 %v710, %v711
    %v713 = vsub.f32 1.0, %v712
    %v714 = vmul.f32 %v711, %v713
    %v715 = vadd.f32 %v711, %v714
    %vm716 = vweird.f32 %v710
    %vm717 = vweird.f32 %v711
    %vm718 = vmor %vm716, %vm717
    %v719 = vsel %vm718, %v711, %v715
    %v720 = vand.u32 2147483647, %v710
    %vm721 = vcmp.eq.f32.partialorder %v720, 8.507059e+37
    %v722 = vand.u32 %v710, 2147483648
    %v723 = vor.u32 1.1754944e-38, %v722
    %v724 = vsel %vm721, %v723, %v719
    %v725 = vmul.f32 %v700, %v724
    %v726 = vmin.f32 %v725, 1.0
    %v727 = vmax.f32 %v726, -1.0
    %v728 = vmul.f32 %v443, %v443
    %v729 = vmin.f32 16.0, %v728
    %v730 = vmul.f32 %v729, 2.1237322e-06
    %v731 = vadd.f32 %v730, 0.00028619796
    %v732 = vmul.f32 %v729, %v731
    %v733 = vadd.f32 %v732, 0.0036580483
    %v734 = vmul.f32 %v729, %v733
    %v735 = vadd.f32 %v734, 0.05243302
    %v736 = vmul.f32 %v729, %v735
    %v737 = vadd.f32 %v736, 0.18741608
    %v738 = vmul.f32 %v729, %v737
    %v739 = vadd.f32 %v738, 1.1283791
    %v740 = vmul.f32 %v443, %v739
    %v741 = vmul.f32 %v729, 3.8918573e-05
    %v742 = vadd.f32 %v741, 0.001143296
    %v743 = vmul.f32 %v729, %v742
    %v744 = vadd.f32 %v743, 0.014752088
    %v745 = vmul.f32 %v729, %v744
    %v746 = vadd.f32 %v745, 0.112945676
    %v747 = vmul.f32 %v729, %v746
    %v748 = vadd.f32 %v747, 0.4994258
    %v749 = vmul.f32 %v729, %v748
    %v750 = vadd.f32 %v749, 1.0
    %v751 = vrcp.pop %v750
    %v752 = vmul.f32 %v750, %v751
    %v753 = vsub.f32 1.0, %v752
    %v754 = vmul.f32 %v751, %v753
    %v755 = vadd.f32 %v751, %v754
    %vm756 = vweird.f32 %v750
    %vm757 = vweird.f32 %v751
    %vm758 = vmor %vm756, %vm757
    %v759 = vsel %vm758, %v751, %v755
    %v760 = vand.u32 2147483647, %v750
    %vm761 = vcmp.eq.f32.partialorder %v760, 8.507059e+37
    %v762 = vand.u32 %v750, 2147483648
    %v763 = vor.u32 1.1754944e-38, %v762
    %v764 = vsel %vm761, %v763, %v759
    %v765 = vmul.f32 %v740, %v764
    %v766 = vmin.f32 %v765, 1.0
    %v767 = vmax.f32 %v766, -1.0
    %v768 = vmul.f32 %v444, %v444
    %v769 = vmin.f32 16.0, %v768
    %v770 = vmul.f32 %v769, 2.1237322e-06
    %v771 = vadd.f32 %v770, 0.00028619796
    %v772 = vmul.f32 %v769, %v771
    %v773 = vadd.f32 %v772, 0.0036580483
    %v774 = vmul.f32 %v769, %v773
    %v775 = vadd.f32 %v774, 0.05243302
    %v776 = vmul.f32 %v769, %v775
    %v777 = vadd.f32 %v776, 0.18741608
    %v778 = vmul.f32 %v769, %v777
    %v779 = vadd.f32 %v778, 1.1283791
    %v780 = vmul.f32 %v444, %v779
    %v781 = vmul.f32 %v769, 3.8918573e-05
    %v782 = vadd.f32 %v781, 0.001143296
    %v783 = vmul.f32 %v769, %v782
    %v784 = vadd.f32 %v783, 0.014752088
    %v785 = vmul.f32 %v769, %v784
    %v786 = vadd.f32 %v785, 0.112945676
    %v787 = vmul.f32 %v769, %v786
    %v788 = vadd.f32 %v787, 0.4994258
    %v789 = vmul.f32 %v769, %v788
    %v790 = vadd.f32 %v789, 1.0
    %v791 = vrcp.pop %v790
    %v792 = vmul.f32 %v790, %v791
    %v793 = vsub.f32 1.0, %v792
    %v794 = vmul.f32 %v791, %v793
    %v795 = vadd.f32 %v791, %v794
    %vm796 = vweird.f32 %v790
    %vm797 = vweird.f32 %v791
    %vm798 = vmor %vm796, %vm797
    %v799 = vsel %vm798, %v791, %v795
    %v800 = vand.u32 2147483647, %v790
    %vm801 = vcmp.eq.f32.partialorder %v800, 8.507059e+37
    %v802 = vand.u32 %v790, 2147483648
    %v803 = vor.u32 1.1754944e-38, %v802
    %v804 = vsel %vm801, %v803, %v799
    %v805 = vmul.f32 %v780, %v804
    %v806 = vmin.f32 %v805, 1.0
    %v807 = vmax.f32 %v806, -1.0
    %v808 = vmul.f32 %v445, %v445
    %v809 = vmin.f32 16.0, %v808
    %v810 = vmul.f32 %v809, 2.1237322e-06
    %v811 = vadd.f32 %v810, 0.00028619796
    %v812 = vmul.f32 %v809, %v811
    %v813 = vadd.f32 %v812, 0.0036580483
    %v814 = vmul.f32 %v809, %v813
    %v815 = vadd.f32 %v814, 0.05243302
    %v816 = vmul.f32 %v809, %v815
    %v817 = vadd.f32 %v816, 0.18741608
    %v818 = vmul.f32 %v809, %v817
    %v819 = vadd.f32 %v818, 1.1283791
    %v820 = vmul.f32 %v445, %v819
    %v821 = vmul.f32 %v809, 3.8918573e-05
    %v822 = vadd.f32 %v821, 0.001143296
    %v823 = vmul.f32 %v809, %v822
    %v824 = vadd.f32 %v823, 0.014752088
    %v825 = vmul.f32 %v809, %v824
    %v826 = vadd.f32 %v825, 0.112945676
    %v827 = vmul.f32 %v809, %v826
    %v828 = vadd.f32 %v827, 0.4994258
    %v829 = vmul.f32 %v809, %v828
    %v830 = vadd.f32 %v829, 1.0
    %v831 = vrcp.pop %v830
    %v832 = vmul.f32 %v830, %v831
    %v833 = vsub.f32 1.0, %v832
    %v834 = vmul.f32 %v831, %v833
    %v835 = vadd.f32 %v831, %v834
    %vm836 = vweird.f32 %v830
    %vm837 = vweird.f32 %v831
    %vm838 = vmor %vm836, %vm837
    %v839 = vsel %vm838, %v831, %v835
    %v840 = vand.u32 2147483647, %v830
    %vm841 = vcmp.eq.f32.partialorder %v840, 8.507059e+37
    %v842 = vand.u32 %v830, 2147483648
    %v843 = vor.u32 1.1754944e-38, %v842
    %v844 = vsel %vm841, %v843, %v839
    %v845 = vmul.f32 %v820, %v844
    %v846 = vmin.f32 %v845, 1.0
    %v847 = vmax.f32 %v846, -1.0
    %v848 = vmul.f32 %v446, %v446
    %v849 = vmin.f32 16.0, %v848
    %v850 = vmul.f32 %v849, 2.1237322e-06
    %v851 = vadd.f32 %v850, 0.00028619796
    %v852 = vmul.f32 %v849, %v851
    %v853 = vadd.f32 %v852, 0.0036580483
    %v854 = vmul.f32 %v849, %v853
    %v855 = vadd.f32 %v854, 0.05243302
    %v856 = vmul.f32 %v849, %v855
    %v857 = vadd.f32 %v856, 0.18741608
    %v858 = vmul.f32 %v849, %v857
    %v859 = vadd.f32 %v858, 1.1283791
    %v860 = vmul.f32 %v446, %v859
    %v861 = vmul.f32 %v849, 3.8918573e-05
    %v862 = vadd.f32 %v861, 0.001143296
    %v863 = vmul.f32 %v849, %v862
    %v864 = vadd.f32 %v863, 0.014752088
    %v865 = vmul.f32 %v849, %v864
    %v866 = vadd.f32 %v865, 0.112945676
    %v867 = vmul.f32 %v849, %v866
    %v868 = vadd.f32 %v867, 0.4994258
    %v869 = vmul.f32 %v849, %v868
    %v870 = vadd.f32 %v869, 1.0
    %v871 = vrcp.pop %v870
    %v872 = vmul.f32 %v870, %v871
    %v873 = vsub.f32 1.0, %v872
    %v874 = vmul.f32 %v871, %v873
    %v875 = vadd.f32 %v871, %v874
    %vm876 = vweird.f32 %v870
    %vm877 = vweird.f32 %v871
    %vm878 = vmor %vm876, %vm877
    %v879 = vsel %vm878, %v871, %v875
    %v880 = vand.u32 2147483647, %v870
    %vm881 = vcmp.eq.f32.partialorder %v880, 8.507059e+37
    %v882 = vand.u32 %v870, 2147483648
    %v883 = vor.u32 1.1754944e-38, %v882
    %v884 = vsel %vm881, %v883, %v879
    %v885 = vmul.f32 %v860, %v884
    %v886 = vmin.f32 %v885, 1.0
    %v887 = vmax.f32 %v886, -1.0
    %v888 = vmul.f32 %v447, %v447
    %v889 = vmin.f32 16.0, %v888
    %v890 = vmul.f32 %v889, 2.1237322e-06
    %v891 = vadd.f32 %v890, 0.00028619796
    %v892 = vmul.f32 %v889, %v891
    %v893 = vadd.f32 %v892, 0.0036580483
    %v894 = vmul.f32 %v889, %v893
    %v895 = vadd.f32 %v894, 0.05243302
    %v896 = vmul.f32 %v889, %v895
    %v897 = vadd.f32 %v896, 0.18741608
    %v898 = vmul.f32 %v889, %v897
    %v899 = vadd.f32 %v898, 1.1283791
    %v900 = vmul.f32 %v447, %v899
    %v901 = vmul.f32 %v889, 3.8918573e-05
    %v902 = vadd.f32 %v901, 0.001143296
    %v903 = vmul.f32 %v889, %v902
    %v904 = vadd.f32 %v903, 0.014752088
    %v905 = vmul.f32 %v889, %v904
    %v906 = vadd.f32 %v905, 0.112945676
    %v907 = vmul.f32 %v889, %v906
    %v908 = vadd.f32 %v907, 0.4994258
    %v909 = vmul.f32 %v889, %v908
    %v910 = vadd.f32 %v909, 1.0
    %v911 = vrcp.pop %v910
    %v912 = vmul.f32 %v910, %v911
    %v913 = vsub.f32 1.0, %v912
    %v914 = vmul.f32 %v911, %v913
    %v915 = vadd.f32 %v911, %v914
    %vm916 = vweird.f32 %v910
    %vm917 = vweird.f32 %v911
    %vm918 = vmor %vm916, %vm917
    %v919 = vsel %vm918, %v911, %v915
    %v920 = vand.u32 2147483647, %v910
    %vm921 = vcmp.eq.f32.partialorder %v920, 8.507059e+37
    %v922 = vand.u32 %v910, 2147483648
    %v923 = vor.u32 1.1754944e-38, %v922
    %v924 = vsel %vm921, %v923, %v919
    %v925 = vmul.f32 %v900, %v924
    %v926 = vmin.f32 %v925, 1.0
    %v927 = vmax.f32 %v926, -1.0
    %v928 = vadd.f32 %v487, 1.0
    %v929 = vadd.f32 %v527, 1.0
    %v930 = vadd.f32 %v567, 1.0
    %v931 = vadd.f32 %v607, 1.0
    %v932 = vadd.f32 %v647, 1.0
    %v933 = vadd.f32 %v687, 1.0
    %v934 = vadd.f32 %v727, 1.0
    %v935 = vadd.f32 %v767, 1.0
    %v936 = vadd.f32 %v807, 1.0
    %v937 = vadd.f32 %v847, 1.0
    %v938 = vadd.f32 %v887, 1.0
    %v939 = vadd.f32 %v927, 1.0
    %v940 = vmul.f32 %v424, %v928
    %v941 = vmul.f32 %v425, %v929
    %v942 = vmul.f32 %v426, %v930
    %v943 = vmul.f32 %v427, %v931
    %v944 = vmul.f32 %v428, %v932
    %v945 = vmul.f32 %v429, %v933
    %v946 = vmul.f32 %v430, %v934
    %v947 = vmul.f32 %v431, %v935
    %v948 = vmul.f32 %v432, %v936
    %v949 = vmul.f32 %v433, %v937
    %v950 = vmul.f32 %v434, %v938
    %v951 = vmul.f32 %v435, %v939
    %v952 = vmul.f32 %v264, %v940
    %v953 = vmul.f32 %v299, %v941
    %v954 = vmul.f32 %v267, %v942
    %v955 = vmul.f32 %v302, %v943
    %v956 = vmul.f32 %v270, %v944
    %v957 = vmul.f32 %v305, %v945
    %v958 = vmul.f32 %v273, %v946
    %v959 = vmul.f32 %v308, %v947
    %v960 = vmul.f32 %v276, %v948
    %v961 = vmul.f32 %v311, %v949
    %v962 = vmul.f32 %v279, %v950
    %v963 = vmul.f32 %v314, %v951
    %v964 = vld [vmem:[#allocation3] sm:$0xff]
    %v965 = vld [vmem:[#allocation3 + $0x8] sm:$0xff]
    %v966 = vld [vmem:[#allocation3 + $0x10] sm:$0xff]
    %v967 = vld [vmem:[#allocation3 + $0x18] sm:$0xff]
    %v968 = vld [vmem:[#allocation3 + $0x20] sm:$0xff]
    %v969 = vld [vmem:[#allocation3 + $0x28] sm:$0xff]
    %v970 = vld [vmem:[%s7] sm:$0xff]
    %v971 = vld [vmem:[%s7 + $0x8] sm:$0xff]
    %v972 = vld [vmem:[%s7 + $0x10] sm:$0xff]
    %v973 = vld [vmem:[%s7 + $0x18] sm:$0xff]
    %v974 = vld [vmem:[%s7 + $0x20] sm:$0xff]
    %v975 = vld [vmem:[%s7 + $0x28] sm:$0xff]
    %v976 = vld [vmem:[%s7 + $0x30] sm:$0xff]
    %v977 = vld [vmem:[%s7 + $0x38] sm:$0xff]
    %v978 = vld [vmem:[%s7 + $0x40] sm:$0xff]
    %v979 = vld [vmem:[%s7 + $0x48] sm:$0xff]
    %v980 = vld [vmem:[%s7 + $0x50] sm:$0xff]
    %v981 = vld [vmem:[%s7 + $0x58] sm:$0xff]
    %v982 = vld [vmem:[%s7 + $0x60] sm:$0xff]
    %v983 = vld [vmem:[%s7 + $0x68] sm:$0xff]
    %v984 = vld [vmem:[%s7 + $0x70] sm:$0xff]
    %v985 = vld [vmem:[%s7 + $0x78] sm:$0xff]
    %v986 = vld [vmem:[%s7 + $0x80] sm:$0xff]
    %v987 = vld [vmem:[%s7 + $0x88] sm:$0xff]
    %v988 = vld [vmem:[%s7 + $0x90] sm:$0xff]
    %v989 = vld [vmem:[%s7 + $0x98] sm:$0xff]
    %v990 = vld [vmem:[%s7 + $0xa0] sm:$0xff]
    %v991 = vld [vmem:[%s7 + $0xa8] sm:$0xff]
    %v992 = vld [vmem:[%s7 + $0xb0] sm:$0xff]
    %v993 = vld [vmem:[%s7 + $0xb8] sm:$0xff]
    %vm994 = vcmask 523264
    %v996 = vsel %vm994, %v953, 0
    %v999 = vsel %vm994, %v955, 0
    %v1002 = vsel %vm994, %v957, 0
    %v1005 = vsel %vm994, %v959, 0
    %v1008 = vsel %vm994, %v961, 0
    %v1011 = vsel %vm994, %v963, 0
    %1013 = vmatpush.msra.mxu0 %v985
    %1014 = vmatpush.msra.mxu0 %v984
    %1015 = vmatpush.msra.mxu0 %v983
    %1016 = vmatpush.msra.mxu0 %v982
    %1017 = vmatpush.msra.mxu0 %v981
    %1018 = vmatpush.msra.mxu0 %v980
    %1019 = vmatpush.msra.mxu0 %v979
    %1020 = vmatpush.msra.mxu0 %v978
    %1021 = vmatpush.msra.mxu0 %v977
    %1022 = vmatpush.msra.mxu0 %v976
    %1023 = vmatpush.msra.mxu0 %v975
    %1024 = vmatpush.msra.mxu0 %v974
    %1025 = vmatpush.msra.mxu0 %v973
    %1026 = vmatpush.msra.mxu0 %v972
    %1027 = vmatpush.msra.mxu0 %v971
    %1028 = vmatpush.msra.mxu0 %v970
    %1029 = vmatmul.f32.gmra.mxu0 %v952
    %v1030 = vpop.f32.mrf.mxu0
    %v1031 = vadd.f32 0.0, %v1030
    %1032 = vmatmul.f32.gmra.mxu0 %v954
    %v1033 = vpop.f32.mrf.mxu0
    %v1034 = vadd.f32 0.0, %v1033
    %1035 = vmatmul.f32.gmra.mxu0 %v956
    %v1036 = vpop.f32.mrf.mxu0
    %v1037 = vadd.f32 0.0, %v1036
    %1038 = vmatmul.f32.gmra.mxu0 %v958
    %v1039 = vpop.f32.mrf.mxu0
    %v1040 = vadd.f32 0.0, %v1039
    %1041 = vmatmul.f32.gmra.mxu0 %v960
    %v1042 = vpop.f32.mrf.mxu0
    %v1043 = vadd.f32 0.0, %v1042
    %1044 = vmatmul.f32.gmra.mxu0 %v962
    %v1045 = vpop.f32.mrf.mxu0
    %v1046 = vadd.f32 0.0, %v1045
    %1047 = vdwg.mxu0
    %1048 = vmatpush.msra.mxu0 0.0
    %1049 = vmatpush.msra.mxu0 0.0
    %1050 = vmatpush.msra.mxu0 0.0
    %1051 = vmatpush.msra.mxu0 0.0
    %1052 = vmatpush.msra.mxu0 0.0
    %1053 = vmatpush.msra.mxu0 0.0
    %1054 = vmatpush.msra.mxu0 0.0
    %1055 = vmatpush.msra.mxu0 0.0
    %1056 = vmatpush.msra.mxu0 %v993
    %1057 = vmatpush.msra.mxu0 %v992
    %1058 = vmatpush.msra.mxu0 %v991
    %1059 = vmatpush.msra.mxu0 %v990
    %1060 = vmatpush.msra.mxu0 %v989
    %1061 = vmatpush.msra.mxu0 %v988
    %1062 = vmatpush.msra.mxu0 %v987
    %1063 = vmatpush.msra.mxu0 %v986
    %1064 = vmatmul.f32.gmra.mxu0 %v996
    %v1065 = vpop.f32.mrf.mxu0
    %v1066 = vadd.f32 %v1031, %v1065
    %1067 = vmatmul.f32.gmra.mxu0 %v999
    %v1068 = vpop.f32.mrf.mxu0
    %v1069 = vadd.f32 %v1034, %v1068
    %1070 = vmatmul.f32.gmra.mxu0 %v1002
    %v1071 = vpop.f32.mrf.mxu0
    %v1072 = vadd.f32 %v1037, %v1071
    %1073 = vmatmul.f32.gmra.mxu0 %v1005
    %v1074 = vpop.f32.mrf.mxu0
    %v1075 = vadd.f32 %v1040, %v1074
    %1076 = vmatmul.f32.gmra.mxu0 %v1008
    %v1077 = vpop.f32.mrf.mxu0
    %v1078 = vadd.f32 %v1043, %v1077
    %1079 = vmatmul.f32.gmra.mxu0 %v1011
    %v1080 = vpop.f32.mrf.mxu0
    %v1081 = vadd.f32 %v1046, %v1080
    %1082 = vdwg.mxu0
    %v1083 = vadd.f32 %v964, %v1066
    %v1084 = vadd.f32 %v965, %v1069
    %v1085 = vadd.f32 %v966, %v1072
    %v1086 = vadd.f32 %v967, %v1075
    %v1087 = vadd.f32 %v968, %v1078
    %v1088 = vadd.f32 %v969, %v1081
    %1089 = vst [vmem:[#allocation3] sm:$0xff] %v1083
    %1090 = vst [vmem:[#allocation3 + $0x8] sm:$0xff] %v1084
    %1091 = vst [vmem:[#allocation3 + $0x10] sm:$0xff] %v1085
    %1092 = vst [vmem:[#allocation3 + $0x18] sm:$0xff] %v1086
    %1093 = vst [vmem:[#allocation3 + $0x20] sm:$0xff] %v1087
    %1094 = vst [vmem:[#allocation3 + $0x28] sm:$0xff] %v1088
    // Predicated region
    $region42: #{tpu_custom_call.1} parent=1 // pred_check
      %p1095 = pneg %p33
    $region43: #{tpu_custom_call.1} parent=1 // pred_check_branch
      %1097 = sbr.rel (%p1095) target = $region45
    $region44: #{tpu_custom_call.1} parent=1 // pred_region
      %v1098 = vld [vmem:[#allocation3] sm:$0xff]
      %v1099 = vld [vmem:[#allocation3 + $0x8] sm:$0xff]
      %v1100 = vld [vmem:[#allocation3 + $0x10] sm:$0xff]
      %v1101 = vld [vmem:[#allocation3 + $0x18] sm:$0xff]
      %v1102 = vld [vmem:[#allocation3 + $0x20] sm:$0xff]
      %v1103 = vld [vmem:[#allocation3 + $0x28] sm:$0xff]
      %v1104 = vld [vmem:[%s8] sm:$0x1]
      %v1106 = vperm.slane %v1104, 0
      %v1108 = vadd.f32 %v1098, %v1106
      %v1109 = vadd.f32 %v1099, %v1106
      %v1110 = vadd.f32 %v1100, %v1106
      %v1111 = vadd.f32 %v1101, %v1106
      %v1112 = vadd.f32 %v1102, %v1106
      %v1113 = vadd.f32 %v1103, %v1106
      %1114 = vst [vmem:[#allocation4] sm:$0xff] %v1108
      %1115 = vst [vmem:[#allocation4 + $0x8] sm:$0xff] %v1109
      %1116 = vst [vmem:[#allocation4 + $0x10] sm:$0xff] %v1110
      %1117 = vst [vmem:[#allocation4 + $0x18] sm:$0xff] %v1111
      %1118 = vst [vmem:[#allocation4 + $0x20] sm:$0xff] %v1112
      %1119 = vst [vmem:[#allocation4 + $0x28] sm:$0xff] %v1113
    $region45: #{tpu_custom_call.1} parent=1 // pred_fallthru
      _
    // Predicated region
    $region46: #{tpu_custom_call.1} parent=1 // pred_check
      _
    $region47: #{tpu_custom_call.1} parent=1 // pred_check_branch
      %1121 = sbr.rel (0) target = $region49
    $region48: #{tpu_custom_call.1} parent=1 // pred_region
      %1123 = vsyncadd [#allocation5], 0
      %s1124 = sshll.u32 [#allocation4], 4
      %s1125 = int_to_ptr.vmem [resolvable:$true] %s1124
      %s1126 = sshll.u32 %s9, 4
      %s1127 = int_to_ptr.hbm [resolvable:$true] %s1126
      %1132 = dma.vmem_to_hbm [thread:$0]  %s1125, 768, %s1127, [#allocation5], 128, 128, 8
    $region49: #{tpu_custom_call.1} parent=1 // pred_fallthru
      _
    // Predicated region
    $region50: #{tpu_custom_call.1} parent=1 // pred_check
      _
    $region51: #{tpu_custom_call.1} parent=1 // pred_check_branch
      %1134 = sbr.rel (0) target = $region53
    $region52: #{tpu_custom_call.1} parent=1 // pred_region
      %1136 = dma.done [#allocation5], 768
    $region53: #{tpu_custom_call.1} parent=1 // pred_fallthru
      _
    %1137 = vsyncpa [#allocation5], 1

// kernel: tpu_custom_call.1
$region0: #{tpu_custom_call.1}
  #allocation0 [shape = 'u32[]', space=smem, size = 0x4, offset = 0x4, fixed_abs, tag = 'smem constant byte address 0x4 - core index']
  #allocation1 [shape = 'u32[72,128]{1,0:T(1,128)}', space=vmem, size = 0x9000, scoped, tag = 'internal scratch']
  #allocation2 [shape = 'f32[48,128]{1,0:T(8,128)}', space=vmem, size = 0x6000, scoped, tag = 'scratch operand']
  #allocation3 [shape = 'f32[48,128]{1,0:T(8,128)}', space=vmem, size = 0x6000, scoped, tag = 'scratch operand']
  %s0 = inlined_call_operand.vmem [shape: f32[48,128], index: 0, kind: input, shape index: {}]
  %s1 = inlined_call_operand.vmem [shape: f32[1,128], index: 1, kind: input, shape index: {}]
  %s2 = inlined_call_operand.vmem [shape: f32[1,128], index: 2, kind: input, shape index: {}]
  %s3 = inlined_call_operand.vmem [shape: f32[128,192], index: 3, kind: input, shape index: {}]
  %s4 = inlined_call_operand.vmem [shape: f32[128,192], index: 4, kind: input, shape index: {}]
  %s5 = inlined_call_operand.vmem [shape: f32[1,192], index: 5, kind: input, shape index: {}]
  %s6 = inlined_call_operand.vmem [shape: f32[1,192], index: 6, kind: input, shape index: {}]
  %s7 = inlined_call_operand.vmem [shape: f32[192,128], index: 7, kind: input, shape index: {}]
  %s8 = inlined_call_operand.vmem [shape: f32[1,128], index: 8, kind: input, shape index: {}]
  %s9 = inlined_call_operand.hbm [shape: f32[48,128], index: 9, kind: output, shape index: {}]
  %s10 = sld [smem:[#allocation0]]
  $region54: #{tpu_custom_call.1} parent=0
    _
  %s12 = ssub.s32 1, %s10
  %s13 = scalar_select 0, %s12, %s10
  $region1: #{tpu_custom_call.1} parent=0
    #allocation4 [shape = 'u8[24576]{0}', space=vmem, size = 0x6000, scoped, tag = 'output window, operand 0, single buffered']
    #allocation5 [shape = 's32[1]{0}', space=sflag, size = 0x4, scoped, tag = 'scoped memory for tpu_custom_call.1']
    %14 = vsyncpa [#allocation5], 0
    // Predicated region
    $region2: #{tpu_custom_call.1} parent=1 // pred_check
      _
    $region3: #{tpu_custom_call.1} parent=1 // pred_check_branch
      %16 = sbr.rel (0) target = $region5
    $region4: #{tpu_custom_call.1} parent=1 // pred_region
      _
    $region5: #{tpu_custom_call.1} parent=1 // pred_fallthru
      _
    // Predicated region
    $region6: #{tpu_custom_call.1} parent=1 // pred_check
      _
    $region7: #{tpu_custom_call.1} parent=1 // pred_check_branch
      %18 = sbr.rel (0) target = $region9
    $region8: #{tpu_custom_call.1} parent=1 // pred_region
      _
    $region9: #{tpu_custom_call.1} parent=1 // pred_fallthru
      _
    // Predicated region
    $region10: #{tpu_custom_call.1} parent=1 // pred_check
      _
    $region11: #{tpu_custom_call.1} parent=1 // pred_check_branch
      %20 = sbr.rel (0) target = $region13
    $region12: #{tpu_custom_call.1} parent=1 // pred_region
      _
    $region13: #{tpu_custom_call.1} parent=1 // pred_fallthru
      _
    // Predicated region
    $region14: #{tpu_custom_call.1} parent=1 // pred_check
      _
    $region15: #{tpu_custom_call.1} parent=1 // pred_check_branch
      %22 = sbr.rel (0) target = $region17
    $region16: #{tpu_custom_call.1} parent=1 // pred_region
      _
    $region17: #{tpu_custom_call.1} parent=1 // pred_fallthru
      _
    // Predicated region
    $region18: #{tpu_custom_call.1} parent=1 // pred_check
      _
    $region19: #{tpu_custom_call.1} parent=1 // pred_check_branch
      %24 = sbr.rel (0) target = $region21
    $region20: #{tpu_custom_call.1} parent=1 // pred_region
      _
    $region21: #{tpu_custom_call.1} parent=1 // pred_fallthru
      _
    // Predicated region
    $region22: #{tpu_custom_call.1} parent=1 // pred_check
      _
    $region23: #{tpu_custom_call.1} parent=1 // pred_check_branch
      %26 = sbr.rel (0) target = $region25
    $region24: #{tpu_custom_call.1} parent=1 // pred_region
      _
    $region25: #{tpu_custom_call.1} parent=1 // pred_fallthru
      _
    // Predicated region
    $region26: #{tpu_custom_call.1} parent=1 // pred_check
      _
    $region27: #{tpu_custom_call.1} parent=1 // pred_check_branch
      %28 = sbr.rel (0) target = $region29
    $region28: #{tpu_custom_call.1} parent=1 // pred_region
      _
    $region29: #{tpu_custom_call.1} parent=1 // pred_fallthru
      _
    // Predicated region
    $region30: #{tpu_custom_call.1} parent=1 // pred_check
      _
    $region31: #{tpu_custom_call.1} parent=1 // pred_check_branch
      %30 = sbr.rel (0) target = $region33
    $region32: #{tpu_custom_call.1} parent=1 // pred_region
      _
    $region33: #{tpu_custom_call.1} parent=1 // pred_fallthru
      _
    // Predicated region
    $region34: #{tpu_custom_call.1} parent=1 // pred_check
      _
    $region35: #{tpu_custom_call.1} parent=1 // pred_check_branch
      %32 = sbr.rel (0) target = $region37
    $region36: #{tpu_custom_call.1} parent=1 // pred_region
      _
    $region37: #{tpu_custom_call.1} parent=1 // pred_fallthru
      _
    %p33 = scmp.eq.s32.totalorder 0, 0
    // Predicated region
    $region38: #{tpu_custom_call.1} parent=1 // pred_check
      %p34 = pneg %p33
    $region39: #{tpu_custom_call.1} parent=1 // pred_check_branch
      %36 = sbr.rel (%p34) target = $region41
    $region40: #{tpu_custom_call.1} parent=1 // pred_region
      %v37 = vld [vmem:[%s0] sm:$0xff]
      %v38 = vld [vmem:[%s0 + $0x8] sm:$0xff]
      %v39 = vld [vmem:[%s0 + $0x10] sm:$0xff]
      %v40 = vld [vmem:[%s0 + $0x18] sm:$0xff]
      %v41 = vld [vmem:[%s0 + $0x20] sm:$0xff]
      %v42 = vld [vmem:[%s0 + $0x28] sm:$0xff]
      %43 = vadd.xlane.f32.xlu0 %v37
      %v44 = vpop.xlane.xlu0 %43
      %45 = vadd.xlane.f32.xlu0 %v38
      %v46 = vpop.xlane.xlu0 %45
      %47 = vadd.xlane.f32.xlu0 %v39
      %v48 = vpop.xlane.xlu0 %47
      %49 = vadd.xlane.f32.xlu0 %v40
      %v50 = vpop.xlane.xlu0 %49
      %51 = vadd.xlane.f32.xlu0 %v41
      %v52 = vpop.xlane.xlu0 %51
      %53 = vadd.xlane.f32.xlu0 %v42
      %v54 = vpop.xlane.xlu0 %53
      %v55 = vrcp.pop 128.0
      %v56 = vmul.f32 128.0, %v55
      %v57 = vsub.f32 1.0, %v56
      %v58 = vmul.f32 %v55, %v57
      %v59 = vadd.f32 %v55, %v58
      %vm60 = vweird.f32 %v55
      %v61 = vsel %vm60, %v55, %v59
      %v62 = vmul.f32 %v44, %v61
      %v63 = vmul.f32 %v46, %v61
      %v64 = vmul.f32 %v48, %v61
      %v65 = vmul.f32 %v50, %v61
      %v66 = vmul.f32 %v52, %v61
      %v67 = vmul.f32 %v54, %v61
      %v68 = vsub.f32 %v37, %v62
      %v69 = vsub.f32 %v38, %v63
      %v70 = vsub.f32 %v39, %v64
      %v71 = vsub.f32 %v40, %v65
      %v72 = vsub.f32 %v41, %v66
      %v73 = vsub.f32 %v42, %v67
      %v74 = vmul.f32 %v68, %v68
      %v75 = vmul.f32 %v69, %v69
      %v76 = vmul.f32 %v70, %v70
      %v77 = vmul.f32 %v71, %v71
      %v78 = vmul.f32 %v72, %v72
      %v79 = vmul.f32 %v73, %v73
      %80 = vadd.xlane.f32.xlu0 %v74
      %v81 = vpop.xlane.xlu0 %80
      %82 = vadd.xlane.f32.xlu0 %v75
      %v83 = vpop.xlane.xlu0 %82
      %84 = vadd.xlane.f32.xlu0 %v76
      %v85 = vpop.xlane.xlu0 %84
      %86 = vadd.xlane.f32.xlu0 %v77
      %v87 = vpop.xlane.xlu0 %86
      %88 = vadd.xlane.f32.xlu0 %v78
      %v89 = vpop.xlane.xlu0 %88
      %90 = vadd.xlane.f32.xlu0 %v79
      %v91 = vpop.xlane.xlu0 %90
      %v92 = vmul.f32 %v81, %v61
      %v93 = vmul.f32 %v83, %v61
      %v94 = vmul.f32 %v85, %v61
      %v95 = vmul.f32 %v87, %v61
      %v96 = vmul.f32 %v89, %v61
      %v97 = vmul.f32 %v91, %v61
      %v98 = vadd.f32 %v92, 1e-05
      %v99 = vadd.f32 %v93, 1e-05
      %v100 = vadd.f32 %v94, 1e-05
      %v101 = vadd.f32 %v95, 1e-05
      %v102 = vadd.f32 %v96, 1e-05
      %v103 = vadd.f32 %v97, 1e-05
      %v104 = vrsqrt.pop %v98
      %v105 = vmul.f32 %v104, %v98
      %v106 = vmul.f32 %v105, %v104
      %v107 = vmul.f32 0.5, %v106
      %v108 = vsub.f32 1.5, %v107
      %v109 = vmul.f32 %v104, %v108
      %vm110 = vweird.f32 %v98
      %vm111 = vweird.f32 %v104
      %vm112 = vmor %vm110, %vm111
      %v113 = vsel %vm112, %v104, %v109
      %v114 = vrsqrt.pop %v99
      %v115 = vmul.f32 %v114, %v99
      %v116 = vmul.f32 %v115, %v114
      %v117 = vmul.f32 0.5, %v116
      %v118 = vsub.f32 1.5, %v117
      %v119 = vmul.f32 %v114, %v118
      %vm120 = vweird.f32 %v99
      %vm121 = vweird.f32 %v114
      %vm122 = vmor %vm120, %vm121
      %v123 = vsel %vm122, %v114, %v119
      %v124 = vrsqrt.pop %v100
      %v125 = vmul.f32 %v124, %v100
      %v126 = vmul.f32 %v125, %v124
      %v127 = vmul.f32 0.5, %v126
      %v128 = vsub.f32 1.5, %v127
      %v129 = vmul.f32 %v124, %v128
      %vm130 = vweird.f32 %v100
      %vm131 = vweird.f32 %v124
      %vm132 = vmor %vm130, %vm131
      %v133 = vsel %vm132, %v124, %v129
      %v134 = vrsqrt.pop %v101
      %v135 = vmul.f32 %v134, %v101
      %v136 = vmul.f32 %v135, %v134
      %v137 = vmul.f32 0.5, %v136
      %v138 = vsub.f32 1.5, %v137
      %v139 = vmul.f32 %v134, %v138
      %vm140 = vweird.f32 %v101
      %vm141 = vweird.f32 %v134
      %vm142 = vmor %vm140, %vm141
      %v143 = vsel %vm142, %v134, %v139
      %v144 = vrsqrt.pop %v102
      %v145 = vmul.f32 %v144, %v102
      %v146 = vmul.f32 %v145, %v144
      %v147 = vmul.f32 0.5, %v146
      %v148 = vsub.f32 1.5, %v147
      %v149 = vmul.f32 %v144, %v148
      %vm150 = vweird.f32 %v102
      %vm151 = vweird.f32 %v144
      %vm152 = vmor %vm150, %vm151
      %v153 = vsel %vm152, %v144, %v149
      %v154 = vrsqrt.pop %v103
      %v155 = vmul.f32 %v154, %v103
      %v156 = vmul.f32 %v155, %v154
      %v157 = vmul.f32 0.5, %v156
      %v158 = vsub.f32 1.5, %v157
      %v159 = vmul.f32 %v154, %v158
      %vm160 = vweird.f32 %v103
      %vm161 = vweird.f32 %v154
      %vm162 = vmor %vm160, %vm161
      %v163 = vsel %vm162, %v154, %v159
      %v164 = vmul.f32 %v68, %v113
      %v165 = vmul.f32 %v69, %v123
      %v166 = vmul.f32 %v70, %v133
      %v167 = vmul.f32 %v71, %v143
      %v168 = vmul.f32 %v72, %v153
      %v169 = vmul.f32 %v73, %v163
      %v170 = vld [vmem:[%s1] sm:$0x1]
      %v172 = vperm.slane %v170, 0
      %v174 = vmul.f32 %v164, %v172
      %v175 = vmul.f32 %v165, %v172
      %v176 = vmul.f32 %v166, %v172
      %v177 = vmul.f32 %v167, %v172
      %v178 = vmul.f32 %v168, %v172
      %v179 = vmul.f32 %v169, %v172
      %v180 = vld [vmem:[%s2] sm:$0x1]
      %v182 = vperm.slane %v180, 0
      %v184 = vadd.f32 %v174, %v182
      %v185 = vadd.f32 %v175, %v182
      %v186 = vadd.f32 %v176, %v182
      %v187 = vadd.f32 %v177, %v182
      %v188 = vadd.f32 %v178, %v182
      %v189 = vadd.f32 %v179, %v182
      %190 = vst [vmem:[#allocation2] sm:$0xff] %v184
      %191 = vst [vmem:[#allocation2 + $0x8] sm:$0xff] %v185
      %192 = vst [vmem:[#allocation2 + $0x10] sm:$0xff] %v186
      %193 = vst [vmem:[#allocation2 + $0x18] sm:$0xff] %v187
      %194 = vst [vmem:[#allocation2 + $0x20] sm:$0xff] %v188
      %195 = vst [vmem:[#allocation2 + $0x28] sm:$0xff] %v189
      %196 = vst [vmem:[#allocation3] sm:$0xff] 0.0
      %197 = vst [vmem:[#allocation3 + $0x8] sm:$0xff] 0.0
      %198 = vst [vmem:[#allocation3 + $0x10] sm:$0xff] 0.0
      %199 = vst [vmem:[#allocation3 + $0x18] sm:$0xff] 0.0
      %200 = vst [vmem:[#allocation3 + $0x20] sm:$0xff] 0.0
      %201 = vst [vmem:[#allocation3 + $0x28] sm:$0xff] 0.0
    $region41: #{tpu_custom_call.1} parent=1 // pred_fallthru
      _
    %v202 = vld [vmem:[#allocation2] sm:$0xff]
    %v203 = vld [vmem:[#allocation2 + $0x8] sm:$0xff]
    %v204 = vld [vmem:[#allocation2 + $0x10] sm:$0xff]
    %v205 = vld [vmem:[#allocation2 + $0x18] sm:$0xff]
    %v206 = vld [vmem:[#allocation2 + $0x20] sm:$0xff]
    %v207 = vld [vmem:[#allocation2 + $0x28] sm:$0xff]
    %v208 = vld [vmem:[%s3] sm:$0xff]
    %v209 = vld [vmem:[%s3 + $0x8] sm:$0xff]
    %v210 = vld [vmem:[%s3 + $0x10] sm:$0xff]
    %v211 = vld [vmem:[%s3 + $0x18] sm:$0xff]
    %v212 = vld [vmem:[%s3 + $0x20] sm:$0xff]
    %v213 = vld [vmem:[%s3 + $0x28] sm:$0xff]
    %v214 = vld [vmem:[%s3 + $0x30] sm:$0xff]
    %v215 = vld [vmem:[%s3 + $0x38] sm:$0xff]
    %v216 = vld [vmem:[%s3 + $0x40] sm:$0xff]
    %v217 = vld [vmem:[%s3 + $0x48] sm:$0xff]
    %v218 = vld [vmem:[%s3 + $0x50] sm:$0xff]
    %v219 = vld [vmem:[%s3 + $0x58] sm:$0xff]
    %v220 = vld [vmem:[%s3 + $0x60] sm:$0xff]
    %v221 = vld [vmem:[%s3 + $0x68] sm:$0xff]
    %v222 = vld [vmem:[%s3 + $0x70] sm:$0xff]
    %v223 = vld [vmem:[%s3 + $0x78] sm:$0xff]
    %v224 = vld [vmem:[%s3 + $0x80] sm:$0xff]
    %v225 = vld [vmem:[%s3 + $0x88] sm:$0xff]
    %v226 = vld [vmem:[%s3 + $0x90] sm:$0xff]
    %v227 = vld [vmem:[%s3 + $0x98] sm:$0xff]
    %v228 = vld [vmem:[%s3 + $0xa0] sm:$0xff]
    %v229 = vld [vmem:[%s3 + $0xa8] sm:$0xff]
    %v230 = vld [vmem:[%s3 + $0xb0] sm:$0xff]
    %v231 = vld [vmem:[%s3 + $0xb8] sm:$0xff]
    %v232 = vld [vmem:[%s3 + $0xc0] sm:$0xff]
    %v233 = vld [vmem:[%s3 + $0xc8] sm:$0xff]
    %v234 = vld [vmem:[%s3 + $0xd0] sm:$0xff]
    %v235 = vld [vmem:[%s3 + $0xd8] sm:$0xff]
    %v236 = vld [vmem:[%s3 + $0xe0] sm:$0xff]
    %v237 = vld [vmem:[%s3 + $0xe8] sm:$0xff]
    %v238 = vld [vmem:[%s3 + $0xf0] sm:$0xff]
    %v239 = vld [vmem:[%s3 + $0xf8] sm:$0xff]
    %v240 = vld [vmem:[%s5] sm:$0x3]
    %v242 = vperm.slane %v240, 0
    %v243 = vperm.slane %v240, 1
    %246 = vmatpush.msra.mxu0 %v238
    %247 = vmatpush.msra.mxu0 %v236
    %248 = vmatpush.msra.mxu0 %v234
    %249 = vmatpush.msra.mxu0 %v232
    %250 = vmatpush.msra.mxu0 %v230
    %251 = vmatpush.msra.mxu0 %v228
    %252 = vmatpush.msra.mxu0 %v226
    %253 = vmatpush.msra.mxu0 %v224
    %254 = vmatpush.msra.mxu0 %v222
    %255 = vmatpush.msra.mxu0 %v220
    %256 = vmatpush.msra.mxu0 %v218
    %257 = vmatpush.msra.mxu0 %v216
    %258 = vmatpush.msra.mxu0 %v214
    %259 = vmatpush.msra.mxu0 %v212
    %260 = vmatpush.msra.mxu0 %v210
    %261 = vmatpush.msra.mxu0 %v208
    %262 = vmatmul.f32.gmra.mxu0 %v202
    %v263 = vpop.f32.mrf.mxu0
    %v264 = vadd.f32 %v242, %v263
    %265 = vmatmul.f32.gmra.mxu0 %v203
    %v266 = vpop.f32.mrf.mxu0
    %v267 = vadd.f32 %v242, %v266
    %268 = vmatmul.f32.gmra.mxu0 %v204
    %v269 = vpop.f32.mrf.mxu0
    %v270 = vadd.f32 %v242, %v269
    %271 = vmatmul.f32.gmra.mxu0 %v205
    %v272 = vpop.f32.mrf.mxu0
    %v273 = vadd.f32 %v242, %v272
    %274 = vmatmul.f32.gmra.mxu0 %v206
    %v275 = vpop.f32.mrf.mxu0
    %v276 = vadd.f32 %v242, %v275
    %277 = vmatmul.f32.gmra.mxu0 %v207
    %v278 = vpop.f32.mrf.mxu0
    %v279 = vadd.f32 %v242, %v278
    %280 = vdwg.mxu0
    %281 = vmatpush.msra.mxu0 %v239
    %282 = vmatpush.msra.mxu0 %v237
    %283 = vmatpush.msra.mxu0 %v235
    %284 = vmatpush.msra.mxu0 %v233
    %285 = vmatpush.msra.mxu0 %v231
    %286 = vmatpush.msra.mxu0 %v229
    %287 = vmatpush.msra.mxu0 %v227
    %288 = vmatpush.msra.mxu0 %v225
    %289 = vmatpush.msra.mxu0 %v223
    %290 = vmatpush.msra.mxu0 %v221
    %291 = vmatpush.msra.mxu0 %v219
    %292 = vmatpush.msra.mxu0 %v217
    %293 = vmatpush.msra.mxu0 %v215
    %294 = vmatpush.msra.mxu0 %v213
    %295 = vmatpush.msra.mxu0 %v211
    %296 = vmatpush.msra.mxu0 %v209
    %297 = vmatmul.f32.gmra.mxu0 %v202
    %v298 = vpop.f32.mrf.mxu0
    %v299 = vadd.f32 %v243, %v298
    %300 = vmatmul.f32.gmra.mxu0 %v203
    %v301 = vpop.f32.mrf.mxu0
    %v302 = vadd.f32 %v243, %v301
    %303 = vmatmul.f32.gmra.mxu0 %v204
    %v304 = vpop.f32.mrf.mxu0
    %v305 = vadd.f32 %v243, %v304
    %306 = vmatmul.f32.gmra.mxu0 %v205
    %v307 = vpop.f32.mrf.mxu0
    %v308 = vadd.f32 %v243, %v307
    %309 = vmatmul.f32.gmra.mxu0 %v206
    %v310 = vpop.f32.mrf.mxu0
    %v311 = vadd.f32 %v243, %v310
    %312 = vmatmul.f32.gmra.mxu0 %v207
    %v313 = vpop.f32.mrf.mxu0
    %v314 = vadd.f32 %v243, %v313
    %315 = vdwg.mxu0
    %v316 = vld [vmem:[%s4] sm:$0xff]
    %v317 = vld [vmem:[%s4 + $0x8] sm:$0xff]
    %v318 = vld [vmem:[%s4 + $0x10] sm:$0xff]
    %v319 = vld [vmem:[%s4 + $0x18] sm:$0xff]
    %v320 = vld [vmem:[%s4 + $0x20] sm:$0xff]
    %v321 = vld [vmem:[%s4 + $0x28] sm:$0xff]
    %v322 = vld [vmem:[%s4 + $0x30] sm:$0xff]
    %v323 = vld [vmem:[%s4 + $0x38] sm:$0xff]
    %v324 = vld [vmem:[%s4 + $0x40] sm:$0xff]
    %v325 = vld [vmem:[%s4 + $0x48] sm:$0xff]
    %v326 = vld [vmem:[%s4 + $0x50] sm:$0xff]
    %v327 = vld [vmem:[%s4 + $0x58] sm:$0xff]
    %v328 = vld [vmem:[%s4 + $0x60] sm:$0xff]
    %v329 = vld [vmem:[%s4 + $0x68] sm:$0xff]
    %v330 = vld [vmem:[%s4 + $0x70] sm:$0xff]
    %v331 = vld [vmem:[%s4 + $0x78] sm:$0xff]
    %v332 = vld [vmem:[%s4 + $0x80] sm:$0xff]
    %v333 = vld [vmem:[%s4 + $0x88] sm:$0xff]
    %v334 = vld [vmem:[%s4 + $0x90] sm:$0xff]
    %v335 = vld [vmem:[%s4 + $0x98] sm:$0xff]
    %v336 = vld [vmem:[%s4 + $0xa0] sm:$0xff]
    %v337 = vld [vmem:[%s4 + $0xa8] sm:$0xff]
    %v338 = vld [vmem:[%s4 + $0xb0] sm:$0xff]
    %v339 = vld [vmem:[%s4 + $0xb8] sm:$0xff]
    %v340 = vld [vmem:[%s4 + $0xc0] sm:$0xff]
    %v341 = vld [vmem:[%s4 + $0xc8] sm:$0xff]
    %v342 = vld [vmem:[%s4 + $0xd0] sm:$0xff]
    %v343 = vld [vmem:[%s4 + $0xd8] sm:$0xff]
    %v344 = vld [vmem:[%s4 + $0xe0] sm:$0xff]
    %v345 = vld [vmem:[%s4 + $0xe8] sm:$0xff]
    %v346 = vld [vmem:[%s4 + $0xf0] sm:$0xff]
    %v347 = vld [vmem:[%s4 + $0xf8] sm:$0xff]
    %v348 = vld [vmem:[%s6] sm:$0x3]
    %v350 = vperm.slane %v348, 0
    %v351 = vperm.slane %v348, 1
    %354 = vmatpush.msra.mxu0 %v346
    %355 = vmatpush.msra.mxu0 %v344
    %356 = vmatpush.msra.mxu0 %v342
    %357 = vmatpush.msra.mxu0 %v340
    %358 = vmatpush.msra.mxu0 %v338
    %359 = vmatpush.msra.mxu0 %v336
    %360 = vmatpush.msra.mxu0 %v334
    %361 = vmatpush.msra.mxu0 %v332
    %362 = vmatpush.msra.mxu0 %v330
    %363 = vmatpush.msra.mxu0 %v328
    %364 = vmatpush.msra.mxu0 %v326
    %365 = vmatpush.msra.mxu0 %v324
    %366 = vmatpush.msra.mxu0 %v322
    %367 = vmatpush.msra.mxu0 %v320
    %368 = vmatpush.msra.mxu0 %v318
    %369 = vmatpush.msra.mxu0 %v316
    %370 = vmatmul.f32.gmra.mxu0 %v202
    %v371 = vpop.f32.mrf.mxu0
    %v372 = vadd.f32 %v350, %v371
    %373 = vmatmul.f32.gmra.mxu0 %v203
    %v374 = vpop.f32.mrf.mxu0
    %v375 = vadd.f32 %v350, %v374
    %376 = vmatmul.f32.gmra.mxu0 %v204
    %v377 = vpop.f32.mrf.mxu0
    %v378 = vadd.f32 %v350, %v377
    %379 = vmatmul.f32.gmra.mxu0 %v205
    %v380 = vpop.f32.mrf.mxu0
    %v381 = vadd.f32 %v350, %v380
    %382 = vmatmul.f32.gmra.mxu0 %v206
    %v383 = vpop.f32.mrf.mxu0
    %v384 = vadd.f32 %v350, %v383
    %385 = vmatmul.f32.gmra.mxu0 %v207
    %v386 = vpop.f32.mrf.mxu0
    %v387 = vadd.f32 %v350, %v386
    %388 = vdwg.mxu0
    %389 = vmatpush.msra.mxu0 %v347
    %390 = vmatpush.msra.mxu0 %v345
    %391 = vmatpush.msra.mxu0 %v343
    %392 = vmatpush.msra.mxu0 %v341
    %393 = vmatpush.msra.mxu0 %v339
    %394 = vmatpush.msra.mxu0 %v337
    %395 = vmatpush.msra.mxu0 %v335
    %396 = vmatpush.msra.mxu0 %v333
    %397 = vmatpush.msra.mxu0 %v331
    %398 = vmatpush.msra.mxu0 %v329
    %399 = vmatpush.msra.mxu0 %v327
    %400 = vmatpush.msra.mxu0 %v325
    %401 = vmatpush.msra.mxu0 %v323
    %402 = vmatpush.msra.mxu0 %v321
    %403 = vmatpush.msra.mxu0 %v319
    %404 = vmatpush.msra.mxu0 %v317
    %405 = vmatmul.f32.gmra.mxu0 %v202
    %v406 = vpop.f32.mrf.mxu0
    %v407 = vadd.f32 %v351, %v406
    %408 = vmatmul.f32.gmra.mxu0 %v203
    %v409 = vpop.f32.mrf.mxu0
    %v410 = vadd.f32 %v351, %v409
    %411 = vmatmul.f32.gmra.mxu0 %v204
    %v412 = vpop.f32.mrf.mxu0
    %v413 = vadd.f32 %v351, %v412
    %414 = vmatmul.f32.gmra.mxu0 %v205
    %v415 = vpop.f32.mrf.mxu0
    %v416 = vadd.f32 %v351, %v415
    %417 = vmatmul.f32.gmra.mxu0 %v206
    %v418 = vpop.f32.mrf.mxu0
    %v419 = vadd.f32 %v351, %v418
    %420 = vmatmul.f32.gmra.mxu0 %v207
    %v421 = vpop.f32.mrf.mxu0
    %v422 = vadd.f32 %v351, %v421
    %423 = vdwg.mxu0
    %v424 = vmul.f32 %v372, 0.5
    %v425 = vmul.f32 %v407, 0.5
    %v426 = vmul.f32 %v375, 0.5
    %v427 = vmul.f32 %v410, 0.5
    %v428 = vmul.f32 %v378, 0.5
    %v429 = vmul.f32 %v413, 0.5
    %v430 = vmul.f32 %v381, 0.5
    %v431 = vmul.f32 %v416, 0.5
    %v432 = vmul.f32 %v384, 0.5
    %v433 = vmul.f32 %v419, 0.5
    %v434 = vmul.f32 %v387, 0.5
    %v435 = vmul.f32 %v422, 0.5
    %v436 = vmul.f32 %v372, 0.70710677
    %v437 = vmul.f32 %v407, 0.70710677
    %v438 = vmul.f32 %v375, 0.70710677
    %v439 = vmul.f32 %v410, 0.70710677
    %v440 = vmul.f32 %v378, 0.70710677
    %v441 = vmul.f32 %v413, 0.70710677
    %v442 = vmul.f32 %v381, 0.70710677
    %v443 = vmul.f32 %v416, 0.70710677
    %v444 = vmul.f32 %v384, 0.70710677
    %v445 = vmul.f32 %v419, 0.70710677
    %v446 = vmul.f32 %v387, 0.70710677
    %v447 = vmul.f32 %v422, 0.70710677
    %v448 = vmul.f32 %v436, %v436
    %v449 = vmin.f32 16.0, %v448
    %v450 = vmul.f32 %v449, 2.1237322e-06
    %v451 = vadd.f32 %v450, 0.00028619796
    %v452 = vmul.f32 %v449, %v451
    %v453 = vadd.f32 %v452, 0.0036580483
    %v454 = vmul.f32 %v449, %v453
    %v455 = vadd.f32 %v454, 0.05243302
    %v456 = vmul.f32 %v449, %v455
    %v457 = vadd.f32 %v456, 0.18741608
    %v458 = vmul.f32 %v449, %v457
    %v459 = vadd.f32 %v458, 1.1283791
    %v460 = vmul.f32 %v436, %v459
    %v461 = vmul.f32 %v449, 3.8918573e-05
    %v462 = vadd.f32 %v461, 0.001143296
    %v463 = vmul.f32 %v449, %v462
    %v464 = vadd.f32 %v463, 0.014752088
    %v465 = vmul.f32 %v449, %v464
    %v466 = vadd.f32 %v465, 0.112945676
    %v467 = vmul.f32 %v449, %v466
    %v468 = vadd.f32 %v467, 0.4994258
    %v469 = vmul.f32 %v449, %v468
    %v470 = vadd.f32 %v469, 1.0
    %v471 = vrcp.pop %v470
    %v472 = vmul.f32 %v470, %v471
    %v473 = vsub.f32 1.0, %v472
    %v474 = vmul.f32 %v471, %v473
    %v475 = vadd.f32 %v471, %v474
    %vm476 = vweird.f32 %v470
    %vm477 = vweird.f32 %v471
    %vm478 = vmor %vm476, %vm477
    %v479 = vsel %vm478, %v471, %v475
    %v480 = vand.u32 2147483647, %v470
    %vm481 = vcmp.eq.f32.partialorder %v480, 8.507059e+37
    %v482 = vand.u32 %v470, 2147483648
    %v483 = vor.u32 1.1754944e-38, %v482
    %v484 = vsel %vm481, %v483, %v479
    %v485 = vmul.f32 %v460, %v484
    %v486 = vmin.f32 %v485, 1.0
    %v487 = vmax.f32 %v486, -1.0
    %v488 = vmul.f32 %v437, %v437
    %v489 = vmin.f32 16.0, %v488
    %v490 = vmul.f32 %v489, 2.1237322e-06
    %v491 = vadd.f32 %v490, 0.00028619796
    %v492 = vmul.f32 %v489, %v491
    %v493 = vadd.f32 %v492, 0.0036580483
    %v494 = vmul.f32 %v489, %v493
    %v495 = vadd.f32 %v494, 0.05243302
    %v496 = vmul.f32 %v489, %v495
    %v497 = vadd.f32 %v496, 0.18741608
    %v498 = vmul.f32 %v489, %v497
    %v499 = vadd.f32 %v498, 1.1283791
    %v500 = vmul.f32 %v437, %v499
    %v501 = vmul.f32 %v489, 3.8918573e-05
    %v502 = vadd.f32 %v501, 0.001143296
    %v503 = vmul.f32 %v489, %v502
    %v504 = vadd.f32 %v503, 0.014752088
    %v505 = vmul.f32 %v489, %v504
    %v506 = vadd.f32 %v505, 0.112945676
    %v507 = vmul.f32 %v489, %v506
    %v508 = vadd.f32 %v507, 0.4994258
    %v509 = vmul.f32 %v489, %v508
    %v510 = vadd.f32 %v509, 1.0
    %v511 = vrcp.pop %v510
    %v512 = vmul.f32 %v510, %v511
    %v513 = vsub.f32 1.0, %v512
    %v514 = vmul.f32 %v511, %v513
    %v515 = vadd.f32 %v511, %v514
    %vm516 = vweird.f32 %v510
    %vm517 = vweird.f32 %v511
    %vm518 = vmor %vm516, %vm517
    %v519 = vsel %vm518, %v511, %v515
    %v520 = vand.u32 2147483647, %v510
    %vm521 = vcmp.eq.f32.partialorder %v520, 8.507059e+37
    %v522 = vand.u32 %v510, 2147483648
    %v523 = vor.u32 1.1754944e-38, %v522
    %v524 = vsel %vm521, %v523, %v519
    %v525 = vmul.f32 %v500, %v524
    %v526 = vmin.f32 %v525, 1.0
    %v527 = vmax.f32 %v526, -1.0
    %v528 = vmul.f32 %v438, %v438
    %v529 = vmin.f32 16.0, %v528
    %v530 = vmul.f32 %v529, 2.1237322e-06
    %v531 = vadd.f32 %v530, 0.00028619796
    %v532 = vmul.f32 %v529, %v531
    %v533 = vadd.f32 %v532, 0.0036580483
    %v534 = vmul.f32 %v529, %v533
    %v535 = vadd.f32 %v534, 0.05243302
    %v536 = vmul.f32 %v529, %v535
    %v537 = vadd.f32 %v536, 0.18741608
    %v538 = vmul.f32 %v529, %v537
    %v539 = vadd.f32 %v538, 1.1283791
    %v540 = vmul.f32 %v438, %v539
    %v541 = vmul.f32 %v529, 3.8918573e-05
    %v542 = vadd.f32 %v541, 0.001143296
    %v543 = vmul.f32 %v529, %v542
    %v544 = vadd.f32 %v543, 0.014752088
    %v545 = vmul.f32 %v529, %v544
    %v546 = vadd.f32 %v545, 0.112945676
    %v547 = vmul.f32 %v529, %v546
    %v548 = vadd.f32 %v547, 0.4994258
    %v549 = vmul.f32 %v529, %v548
    %v550 = vadd.f32 %v549, 1.0
    %v551 = vrcp.pop %v550
    %v552 = vmul.f32 %v550, %v551
    %v553 = vsub.f32 1.0, %v552
    %v554 = vmul.f32 %v551, %v553
    %v555 = vadd.f32 %v551, %v554
    %vm556 = vweird.f32 %v550
    %vm557 = vweird.f32 %v551
    %vm558 = vmor %vm556, %vm557
    %v559 = vsel %vm558, %v551, %v555
    %v560 = vand.u32 2147483647, %v550
    %vm561 = vcmp.eq.f32.partialorder %v560, 8.507059e+37
    %v562 = vand.u32 %v550, 2147483648
    %v563 = vor.u32 1.1754944e-38, %v562
    %v564 = vsel %vm561, %v563, %v559
    %v565 = vmul.f32 %v540, %v564
    %v566 = vmin.f32 %v565, 1.0
    %v567 = vmax.f32 %v566, -1.0
    %v568 = vmul.f32 %v439, %v439
    %v569 = vmin.f32 16.0, %v568
    %v570 = vmul.f32 %v569, 2.1237322e-06
    %v571 = vadd.f32 %v570, 0.00028619796
    %v572 = vmul.f32 %v569, %v571
    %v573 = vadd.f32 %v572, 0.0036580483
    %v574 = vmul.f32 %v569, %v573
    %v575 = vadd.f32 %v574, 0.05243302
    %v576 = vmul.f32 %v569, %v575
    %v577 = vadd.f32 %v576, 0.18741608
    %v578 = vmul.f32 %v569, %v577
    %v579 = vadd.f32 %v578, 1.1283791
    %v580 = vmul.f32 %v439, %v579
    %v581 = vmul.f32 %v569, 3.8918573e-05
    %v582 = vadd.f32 %v581, 0.001143296
    %v583 = vmul.f32 %v569, %v582
    %v584 = vadd.f32 %v583, 0.014752088
    %v585 = vmul.f32 %v569, %v584
    %v586 = vadd.f32 %v585, 0.112945676
    %v587 = vmul.f32 %v569, %v586
    %v588 = vadd.f32 %v587, 0.4994258
    %v589 = vmul.f32 %v569, %v588
    %v590 = vadd.f32 %v589, 1.0
    %v591 = vrcp.pop %v590
    %v592 = vmul.f32 %v590, %v591
    %v593 = vsub.f32 1.0, %v592
    %v594 = vmul.f32 %v591, %v593
    %v595 = vadd.f32 %v591, %v594
    %vm596 = vweird.f32 %v590
    %vm597 = vweird.f32 %v591
    %vm598 = vmor %vm596, %vm597
    %v599 = vsel %vm598, %v591, %v595
    %v600 = vand.u32 2147483647, %v590
    %vm601 = vcmp.eq.f32.partialorder %v600, 8.507059e+37
    %v602 = vand.u32 %v590, 2147483648
    %v603 = vor.u32 1.1754944e-38, %v602
    %v604 = vsel %vm601, %v603, %v599
    %v605 = vmul.f32 %v580, %v604
    %v606 = vmin.f32 %v605, 1.0
    %v607 = vmax.f32 %v606, -1.0
    %v608 = vmul.f32 %v440, %v440
    %v609 = vmin.f32 16.0, %v608
    %v610 = vmul.f32 %v609, 2.1237322e-06
    %v611 = vadd.f32 %v610, 0.00028619796
    %v612 = vmul.f32 %v609, %v611
    %v613 = vadd.f32 %v612, 0.0036580483
    %v614 = vmul.f32 %v609, %v613
    %v615 = vadd.f32 %v614, 0.05243302
    %v616 = vmul.f32 %v609, %v615
    %v617 = vadd.f32 %v616, 0.18741608
    %v618 = vmul.f32 %v609, %v617
    %v619 = vadd.f32 %v618, 1.1283791
    %v620 = vmul.f32 %v440, %v619
    %v621 = vmul.f32 %v609, 3.8918573e-05
    %v622 = vadd.f32 %v621, 0.001143296
    %v623 = vmul.f32 %v609, %v622
    %v624 = vadd.f32 %v623, 0.014752088
    %v625 = vmul.f32 %v609, %v624
    %v626 = vadd.f32 %v625, 0.112945676
    %v627 = vmul.f32 %v609, %v626
    %v628 = vadd.f32 %v627, 0.4994258
    %v629 = vmul.f32 %v609, %v628
    %v630 = vadd.f32 %v629, 1.0
    %v631 = vrcp.pop %v630
    %v632 = vmul.f32 %v630, %v631
    %v633 = vsub.f32 1.0, %v632
    %v634 = vmul.f32 %v631, %v633
    %v635 = vadd.f32 %v631, %v634
    %vm636 = vweird.f32 %v630
    %vm637 = vweird.f32 %v631
    %vm638 = vmor %vm636, %vm637
    %v639 = vsel %vm638, %v631, %v635
    %v640 = vand.u32 2147483647, %v630
    %vm641 = vcmp.eq.f32.partialorder %v640, 8.507059e+37
    %v642 = vand.u32 %v630, 2147483648
    %v643 = vor.u32 1.1754944e-38, %v642
    %v644 = vsel %vm641, %v643, %v639
    %v645 = vmul.f32 %v620, %v644
    %v646 = vmin.f32 %v645, 1.0
    %v647 = vmax.f32 %v646, -1.0
    %v648 = vmul.f32 %v441, %v441
    %v649 = vmin.f32 16.0, %v648
    %v650 = vmul.f32 %v649, 2.1237322e-06
    %v651 = vadd.f32 %v650, 0.00028619796
    %v652 = vmul.f32 %v649, %v651
    %v653 = vadd.f32 %v652, 0.0036580483
    %v654 = vmul.f32 %v649, %v653
    %v655 = vadd.f32 %v654, 0.05243302
    %v656 = vmul.f32 %v649, %v655
    %v657 = vadd.f32 %v656, 0.18741608
    %v658 = vmul.f32 %v649, %v657
    %v659 = vadd.f32 %v658, 1.1283791
    %v660 = vmul.f32 %v441, %v659
    %v661 = vmul.f32 %v649, 3.8918573e-05
    %v662 = vadd.f32 %v661, 0.001143296
    %v663 = vmul.f32 %v649, %v662
    %v664 = vadd.f32 %v663, 0.014752088
    %v665 = vmul.f32 %v649, %v664
    %v666 = vadd.f32 %v665, 0.112945676
    %v667 = vmul.f32 %v649, %v666
    %v668 = vadd.f32 %v667, 0.4994258
    %v669 = vmul.f32 %v649, %v668
    %v670 = vadd.f32 %v669, 1.0
    %v671 = vrcp.pop %v670
    %v672 = vmul.f32 %v670, %v671
    %v673 = vsub.f32 1.0, %v672
    %v674 = vmul.f32 %v671, %v673
    %v675 = vadd.f32 %v671, %v674
    %vm676 = vweird.f32 %v670
    %vm677 = vweird.f32 %v671
    %vm678 = vmor %vm676, %vm677
    %v679 = vsel %vm678, %v671, %v675
    %v680 = vand.u32 2147483647, %v670
    %vm681 = vcmp.eq.f32.partialorder %v680, 8.507059e+37
    %v682 = vand.u32 %v670, 2147483648
    %v683 = vor.u32 1.1754944e-38, %v682
    %v684 = vsel %vm681, %v683, %v679
    %v685 = vmul.f32 %v660, %v684
    %v686 = vmin.f32 %v685, 1.0
    %v687 = vmax.f32 %v686, -1.0
    %v688 = vmul.f32 %v442, %v442
    %v689 = vmin.f32 16.0, %v688
    %v690 = vmul.f32 %v689, 2.1237322e-06
    %v691 = vadd.f32 %v690, 0.00028619796
    %v692 = vmul.f32 %v689, %v691
    %v693 = vadd.f32 %v692, 0.0036580483
    %v694 = vmul.f32 %v689, %v693
    %v695 = vadd.f32 %v694, 0.05243302
    %v696 = vmul.f32 %v689, %v695
    %v697 = vadd.f32 %v696, 0.18741608
    %v698 = vmul.f32 %v689, %v697
    %v699 = vadd.f32 %v698, 1.1283791
    %v700 = vmul.f32 %v442, %v699
    %v701 = vmul.f32 %v689, 3.8918573e-05
    %v702 = vadd.f32 %v701, 0.001143296
    %v703 = vmul.f32 %v689, %v702
    %v704 = vadd.f32 %v703, 0.014752088
    %v705 = vmul.f32 %v689, %v704
    %v706 = vadd.f32 %v705, 0.112945676
    %v707 = vmul.f32 %v689, %v706
    %v708 = vadd.f32 %v707, 0.4994258
    %v709 = vmul.f32 %v689, %v708
    %v710 = vadd.f32 %v709, 1.0
    %v711 = vrcp.pop %v710
    %v712 = vmul.f32 %v710, %v711
    %v713 = vsub.f32 1.0, %v712
    %v714 = vmul.f32 %v711, %v713
    %v715 = vadd.f32 %v711, %v714
    %vm716 = vweird.f32 %v710
    %vm717 = vweird.f32 %v711
    %vm718 = vmor %vm716, %vm717
    %v719 = vsel %vm718, %v711, %v715
    %v720 = vand.u32 2147483647, %v710
    %vm721 = vcmp.eq.f32.partialorder %v720, 8.507059e+37
    %v722 = vand.u32 %v710, 2147483648
    %v723 = vor.u32 1.1754944e-38, %v722
    %v724 = vsel %vm721, %v723, %v719
    %v725 = vmul.f32 %v700, %v724
    %v726 = vmin.f32 %v725, 1.0
    %v727 = vmax.f32 %v726, -1.0
    %v728 = vmul.f32 %v443, %v443
    %v729 = vmin.f32 16.0, %v728
    %v730 = vmul.f32 %v729, 2.1237322e-06
    %v731 = vadd.f32 %v730, 0.00028619796
    %v732 = vmul.f32 %v729, %v731
    %v733 = vadd.f32 %v732, 0.0036580483
    %v734 = vmul.f32 %v729, %v733
    %v735 = vadd.f32 %v734, 0.05243302
    %v736 = vmul.f32 %v729, %v735
    %v737 = vadd.f32 %v736, 0.18741608
    %v738 = vmul.f32 %v729, %v737
    %v739 = vadd.f32 %v738, 1.1283791
    %v740 = vmul.f32 %v443, %v739
    %v741 = vmul.f32 %v729, 3.8918573e-05
    %v742 = vadd.f32 %v741, 0.001143296
    %v743 = vmul.f32 %v729, %v742
    %v744 = vadd.f32 %v743, 0.014752088
    %v745 = vmul.f32 %v729, %v744
    %v746 = vadd.f32 %v745, 0.112945676
    %v747 = vmul.f32 %v729, %v746
    %v748 = vadd.f32 %v747, 0.4994258
    %v749 = vmul.f32 %v729, %v748
    %v750 = vadd.f32 %v749, 1.0
    %v751 = vrcp.pop %v750
    %v752 = vmul.f32 %v750, %v751
    %v753 = vsub.f32 1.0, %v752
    %v754 = vmul.f32 %v751, %v753
    %v755 = vadd.f32 %v751, %v754
    %vm756 = vweird.f32 %v750
    %vm757 = vweird.f32 %v751
    %vm758 = vmor %vm756, %vm757
    %v759 = vsel %vm758, %v751, %v755
    %v760 = vand.u32 2147483647, %v750
    %vm761 = vcmp.eq.f32.partialorder %v760, 8.507059e+37
    %v762 = vand.u32 %v750, 2147483648
    %v763 = vor.u32 1.1754944e-38, %v762
    %v764 = vsel %vm761, %v763, %v759
    %v765 = vmul.f32 %v740, %v764
    %v766 = vmin.f32 %v765, 1.0
    %v767 = vmax.f32 %v766, -1.0
    %v768 = vmul.f32 %v444, %v444
    %v769 = vmin.f32 16.0, %v768
    %v770 = vmul.f32 %v769, 2.1237322e-06
    %v771 = vadd.f32 %v770, 0.00028619796
    %v772 = vmul.f32 %v769, %v771
    %v773 = vadd.f32 %v772, 0.0036580483
    %v774 = vmul.f32 %v769, %v773
    %v775 = vadd.f32 %v774, 0.05243302
    %v776 = vmul.f32 %v769, %v775
    %v777 = vadd.f32 %v776, 0.18741608
    %v778 = vmul.f32 %v769, %v777
    %v779 = vadd.f32 %v778, 1.1283791
    %v780 = vmul.f32 %v444, %v779
    %v781 = vmul.f32 %v769, 3.8918573e-05
    %v782 = vadd.f32 %v781, 0.001143296
    %v783 = vmul.f32 %v769, %v782
    %v784 = vadd.f32 %v783, 0.014752088
    %v785 = vmul.f32 %v769, %v784
    %v786 = vadd.f32 %v785, 0.112945676
    %v787 = vmul.f32 %v769, %v786
    %v788 = vadd.f32 %v787, 0.4994258
    %v789 = vmul.f32 %v769, %v788
    %v790 = vadd.f32 %v789, 1.0
    %v791 = vrcp.pop %v790
    %v792 = vmul.f32 %v790, %v791
    %v793 = vsub.f32 1.0, %v792
    %v794 = vmul.f32 %v791, %v793
    %v795 = vadd.f32 %v791, %v794
    %vm796 = vweird.f32 %v790
    %vm797 = vweird.f32 %v791
    %vm798 = vmor %vm796, %vm797
    %v799 = vsel %vm798, %v791, %v795
    %v800 = vand.u32 2147483647, %v790
    %vm801 = vcmp.eq.f32.partialorder %v800, 8.507059e+37
    %v802 = vand.u32 %v790, 2147483648
    %v803 = vor.u32 1.1754944e-38, %v802
    %v804 = vsel %vm801, %v803, %v799
    %v805 = vmul.f32 %v780, %v804
    %v806 = vmin.f32 %v805, 1.0
    %v807 = vmax.f32 %v806, -1.0
    %v808 = vmul.f32 %v445, %v445
    %v809 = vmin.f32 16.0, %v808
    %v810 = vmul.f32 %v809, 2.1237322e-06
    %v811 = vadd.f32 %v810, 0.00028619796
    %v812 = vmul.f32 %v809, %v811
    %v813 = vadd.f32 %v812, 0.0036580483
    %v814 = vmul.f32 %v809, %v813
    %v815 = vadd.f32 %v814, 0.05243302
    %v816 = vmul.f32 %v809, %v815
    %v817 = vadd.f32 %v816, 0.18741608
    %v818 = vmul.f32 %v809, %v817
    %v819 = vadd.f32 %v818, 1.1283791
    %v820 = vmul.f32 %v445, %v819
    %v821 = vmul.f32 %v809, 3.8918573e-05
    %v822 = vadd.f32 %v821, 0.001143296
    %v823 = vmul.f32 %v809, %v822
    %v824 = vadd.f32 %v823, 0.014752088
    %v825 = vmul.f32 %v809, %v824
    %v826 = vadd.f32 %v825, 0.112945676
    %v827 = vmul.f32 %v809, %v826
    %v828 = vadd.f32 %v827, 0.4994258
    %v829 = vmul.f32 %v809, %v828
    %v830 = vadd.f32 %v829, 1.0
    %v831 = vrcp.pop %v830
    %v832 = vmul.f32 %v830, %v831
    %v833 = vsub.f32 1.0, %v832
    %v834 = vmul.f32 %v831, %v833
    %v835 = vadd.f32 %v831, %v834
    %vm836 = vweird.f32 %v830
    %vm837 = vweird.f32 %v831
    %vm838 = vmor %vm836, %vm837
    %v839 = vsel %vm838, %v831, %v835
    %v840 = vand.u32 2147483647, %v830
    %vm841 = vcmp.eq.f32.partialorder %v840, 8.507059e+37
    %v842 = vand.u32 %v830, 2147483648
    %v843 = vor.u32 1.1754944e-38, %v842
    %v844 = vsel %vm841, %v843, %v839
    %v845 = vmul.f32 %v820, %v844
    %v846 = vmin.f32 %v845, 1.0
    %v847 = vmax.f32 %v846, -1.0
    %v848 = vmul.f32 %v446, %v446
    %v849 = vmin.f32 16.0, %v848
    %v850 = vmul.f32 %v849, 2.1237322e-06
    %v851 = vadd.f32 %v850, 0.00028619796
    %v852 = vmul.f32 %v849, %v851
    %v853 = vadd.f32 %v852, 0.0036580483
    %v854 = vmul.f32 %v849, %v853
    %v855 = vadd.f32 %v854, 0.05243302
    %v856 = vmul.f32 %v849, %v855
    %v857 = vadd.f32 %v856, 0.18741608
    %v858 = vmul.f32 %v849, %v857
    %v859 = vadd.f32 %v858, 1.1283791
    %v860 = vmul.f32 %v446, %v859
    %v861 = vmul.f32 %v849, 3.8918573e-05
    %v862 = vadd.f32 %v861, 0.001143296
    %v863 = vmul.f32 %v849, %v862
    %v864 = vadd.f32 %v863, 0.014752088
    %v865 = vmul.f32 %v849, %v864
    %v866 = vadd.f32 %v865, 0.112945676
    %v867 = vmul.f32 %v849, %v866
    %v868 = vadd.f32 %v867, 0.4994258
    %v869 = vmul.f32 %v849, %v868
    %v870 = vadd.f32 %v869, 1.0
    %v871 = vrcp.pop %v870
    %v872 = vmul.f32 %v870, %v871
    %v873 = vsub.f32 1.0, %v872
    %v874 = vmul.f32 %v871, %v873
    %v875 = vadd.f32 %v871, %v874
    %vm876 = vweird.f32 %v870
    %vm877 = vweird.f32 %v871
    %vm878 = vmor %vm876, %vm877
    %v879 = vsel %vm878, %v871, %v875
    %v880 = vand.u32 2147483647, %v870
    %vm881 = vcmp.eq.f32.partialorder %v880, 8.507059e+37
    %v882 = vand.u32 %v870, 2147483648
    %v883 = vor.u32 1.1754944e-38, %v882
    %v884 = vsel %vm881, %v883, %v879
    %v885 = vmul.f32 %v860, %v884
    %v886 = vmin.f32 %v885, 1.0
    %v887 = vmax.f32 %v886, -1.0
    %v888 = vmul.f32 %v447, %v447
    %v889 = vmin.f32 16.0, %v888
    %v890 = vmul.f32 %v889, 2.1237322e-06
    %v891 = vadd.f32 %v890, 0.00028619796
    %v892 = vmul.f32 %v889, %v891
    %v893 = vadd.f32 %v892, 0.0036580483
    %v894 = vmul.f32 %v889, %v893
    %v895 = vadd.f32 %v894, 0.05243302
    %v896 = vmul.f32 %v889, %v895
    %v897 = vadd.f32 %v896, 0.18741608
    %v898 = vmul.f32 %v889, %v897
    %v899 = vadd.f32 %v898, 1.1283791
    %v900 = vmul.f32 %v447, %v899
    %v901 = vmul.f32 %v889, 3.8918573e-05
    %v902 = vadd.f32 %v901, 0.001143296
    %v903 = vmul.f32 %v889, %v902
    %v904 = vadd.f32 %v903, 0.014752088
    %v905 = vmul.f32 %v889, %v904
    %v906 = vadd.f32 %v905, 0.112945676
    %v907 = vmul.f32 %v889, %v906
    %v908 = vadd.f32 %v907, 0.4994258
    %v909 = vmul.f32 %v889, %v908
    %v910 = vadd.f32 %v909, 1.0
    %v911 = vrcp.pop %v910
    %v912 = vmul.f32 %v910, %v911
    %v913 = vsub.f32 1.0, %v912
    %v914 = vmul.f32 %v911, %v913
    %v915 = vadd.f32 %v911, %v914
    %vm916 = vweird.f32 %v910
    %vm917 = vweird.f32 %v911
    %vm918 = vmor %vm916, %vm917
    %v919 = vsel %vm918, %v911, %v915
    %v920 = vand.u32 2147483647, %v910
    %vm921 = vcmp.eq.f32.partialorder %v920, 8.507059e+37
    %v922 = vand.u32 %v910, 2147483648
    %v923 = vor.u32 1.1754944e-38, %v922
    %v924 = vsel %vm921, %v923, %v919
    %v925 = vmul.f32 %v900, %v924
    %v926 = vmin.f32 %v925, 1.0
    %v927 = vmax.f32 %v926, -1.0
    %v928 = vadd.f32 %v487, 1.0
    %v929 = vadd.f32 %v527, 1.0
    %v930 = vadd.f32 %v567, 1.0
    %v931 = vadd.f32 %v607, 1.0
    %v932 = vadd.f32 %v647, 1.0
    %v933 = vadd.f32 %v687, 1.0
    %v934 = vadd.f32 %v727, 1.0
    %v935 = vadd.f32 %v767, 1.0
    %v936 = vadd.f32 %v807, 1.0
    %v937 = vadd.f32 %v847, 1.0
    %v938 = vadd.f32 %v887, 1.0
    %v939 = vadd.f32 %v927, 1.0
    %v940 = vmul.f32 %v424, %v928
    %v941 = vmul.f32 %v425, %v929
    %v942 = vmul.f32 %v426, %v930
    %v943 = vmul.f32 %v427, %v931
    %v944 = vmul.f32 %v428, %v932
    %v945 = vmul.f32 %v429, %v933
    %v946 = vmul.f32 %v430, %v934
    %v947 = vmul.f32 %v431, %v935
    %v948 = vmul.f32 %v432, %v936
    %v949 = vmul.f32 %v433, %v937
    %v950 = vmul.f32 %v434, %v938
    %v951 = vmul.f32 %v435, %v939
    %v952 = vmul.f32 %v264, %v940
    %v953 = vmul.f32 %v299, %v941
    %v954 = vmul.f32 %v267, %v942
    %v955 = vmul.f32 %v302, %v943
    %v956 = vmul.f32 %v270, %v944
    %v957 = vmul.f32 %v305, %v945
    %v958 = vmul.f32 %v273, %v946
    %v959 = vmul.f32 %v308, %v947
    %v960 = vmul.f32 %v276, %v948
    %v961 = vmul.f32 %v311, %v949
    %v962 = vmul.f32 %v279, %v950
    %v963 = vmul.f32 %v314, %v951
    %v964 = vld [vmem:[#allocation3] sm:$0xff]
    %v965 = vld [vmem:[#allocation3 + $0x8] sm:$0xff]
    %v966 = vld [vmem:[#allocation3 + $0x10] sm:$0xff]
    %v967 = vld [vmem:[#allocation3 + $0x18] sm:$0xff]
    %v968 = vld [vmem:[#allocation3 + $0x20] sm:$0xff]
    %v969 = vld [vmem:[#allocation3 + $0x28] sm:$0xff]
    %v970 = vld [vmem:[%s7] sm:$0xff]
    %v971 = vld [vmem:[%s7 + $0x8] sm:$0xff]
    %v972 = vld [vmem:[%s7 + $0x10] sm:$0xff]
    %v973 = vld [vmem:[%s7 + $0x18] sm:$0xff]
    %v974 = vld [vmem:[%s7 + $0x20] sm:$0xff]
    %v975 = vld [vmem:[%s7 + $0x28] sm:$0xff]
    %v976 = vld [vmem:[%s7 + $0x30] sm:$0xff]
    %v977 = vld [vmem:[%s7 + $0x38] sm:$0xff]
    %v978 = vld [vmem:[%s7 + $0x40] sm:$0xff]
    %v979 = vld [vmem:[%s7 + $0x48] sm:$0xff]
    %v980 = vld [vmem:[%s7 + $0x50] sm:$0xff]
    %v981 = vld [vmem:[%s7 + $0x58] sm:$0xff]
    %v982 = vld [vmem:[%s7 + $0x60] sm:$0xff]
    %v983 = vld [vmem:[%s7 + $0x68] sm:$0xff]
    %v984 = vld [vmem:[%s7 + $0x70] sm:$0xff]
    %v985 = vld [vmem:[%s7 + $0x78] sm:$0xff]
    %v986 = vld [vmem:[%s7 + $0x80] sm:$0xff]
    %v987 = vld [vmem:[%s7 + $0x88] sm:$0xff]
    %v988 = vld [vmem:[%s7 + $0x90] sm:$0xff]
    %v989 = vld [vmem:[%s7 + $0x98] sm:$0xff]
    %v990 = vld [vmem:[%s7 + $0xa0] sm:$0xff]
    %v991 = vld [vmem:[%s7 + $0xa8] sm:$0xff]
    %v992 = vld [vmem:[%s7 + $0xb0] sm:$0xff]
    %v993 = vld [vmem:[%s7 + $0xb8] sm:$0xff]
    %vm994 = vcmask 523264
    %v996 = vsel %vm994, %v953, 0
    %v999 = vsel %vm994, %v955, 0
    %v1002 = vsel %vm994, %v957, 0
    %v1005 = vsel %vm994, %v959, 0
    %v1008 = vsel %vm994, %v961, 0
    %v1011 = vsel %vm994, %v963, 0
    %1013 = vmatpush.msra.mxu0 %v985
    %1014 = vmatpush.msra.mxu0 %v984
    %1015 = vmatpush.msra.mxu0 %v983
    %1016 = vmatpush.msra.mxu0 %v982
    %1017 = vmatpush.msra.mxu0 %v981
    %1018 = vmatpush.msra.mxu0 %v980
    %1019 = vmatpush.msra.mxu0 %v979
    %1020 = vmatpush.msra.mxu0 %v978
    %1021 = vmatpush.msra.mxu0 %v977
    %1022 = vmatpush.msra.mxu0 %v976
    %1023 = vmatpush.msra.mxu0 %v975
    %1024 = vmatpush.msra.mxu0 %v974
    %1025 = vmatpush.msra.mxu0 %v973
    %1026 = vmatpush.msra.mxu0 %v972
    %1027 = vmatpush.msra.mxu0 %v971
    %1028 = vmatpush.msra.mxu0 %v970
    %1029 = vmatmul.f32.gmra.mxu0 %v952
    %v1030 = vpop.f32.mrf.mxu0
    %v1031 = vadd.f32 0.0, %v1030
    %1032 = vmatmul.f32.gmra.mxu0 %v954
    %v1033 = vpop.f32.mrf.mxu0
    %v1034 = vadd.f32 0.0, %v1033
    %1035 = vmatmul.f32.gmra.mxu0 %v956
    %v1036 = vpop.f32.mrf.mxu0
    %v1037 = vadd.f32 0.0, %v1036
    %1038 = vmatmul.f32.gmra.mxu0 %v958
    %v1039 = vpop.f32.mrf.mxu0
    %v1040 = vadd.f32 0.0, %v1039
    %1041 = vmatmul.f32.gmra.mxu0 %v960
    %v1042 = vpop.f32.mrf.mxu0
    %v1043 = vadd.f32 0.0, %v1042
    %1044 = vmatmul.f32.gmra.mxu0 %v962
    %v1045 = vpop.f32.mrf.mxu0
    %v1046 = vadd.f32 0.0, %v1045
    %1047 = vdwg.mxu0
    %1048 = vmatpush.msra.mxu0 0.0
    %1049 = vmatpush.msra.mxu0 0.0
    %1050 = vmatpush.msra.mxu0 0.0
    %1051 = vmatpush.msra.mxu0 0.0
    %1052 = vmatpush.msra.mxu0 0.0
    %1053 = vmatpush.msra.mxu0 0.0
    %1054 = vmatpush.msra.mxu0 0.0
    %1055 = vmatpush.msra.mxu0 0.0
    %1056 = vmatpush.msra.mxu0 %v993
    %1057 = vmatpush.msra.mxu0 %v992
    %1058 = vmatpush.msra.mxu0 %v991
    %1059 = vmatpush.msra.mxu0 %v990
    %1060 = vmatpush.msra.mxu0 %v989
    %1061 = vmatpush.msra.mxu0 %v988
    %1062 = vmatpush.msra.mxu0 %v987
    %1063 = vmatpush.msra.mxu0 %v986
    %1064 = vmatmul.f32.gmra.mxu0 %v996
    %v1065 = vpop.f32.mrf.mxu0
    %v1066 = vadd.f32 %v1031, %v1065
    %1067 = vmatmul.f32.gmra.mxu0 %v999
    %v1068 = vpop.f32.mrf.mxu0
    %v1069 = vadd.f32 %v1034, %v1068
    %1070 = vmatmul.f32.gmra.mxu0 %v1002
    %v1071 = vpop.f32.mrf.mxu0
    %v1072 = vadd.f32 %v1037, %v1071
    %1073 = vmatmul.f32.gmra.mxu0 %v1005
    %v1074 = vpop.f32.mrf.mxu0
    %v1075 = vadd.f32 %v1040, %v1074
    %1076 = vmatmul.f32.gmra.mxu0 %v1008
    %v1077 = vpop.f32.mrf.mxu0
    %v1078 = vadd.f32 %v1043, %v1077
    %1079 = vmatmul.f32.gmra.mxu0 %v1011
    %v1080 = vpop.f32.mrf.mxu0
    %v1081 = vadd.f32 %v1046, %v1080
    %1082 = vdwg.mxu0
    %v1083 = vadd.f32 %v964, %v1066
    %v1084 = vadd.f32 %v965, %v1069
    %v1085 = vadd.f32 %v966, %v1072
    %v1086 = vadd.f32 %v967, %v1075
    %v1087 = vadd.f32 %v968, %v1078
    %v1088 = vadd.f32 %v969, %v1081
    %1089 = vst [vmem:[#allocation3] sm:$0xff] %v1083
    %1090 = vst [vmem:[#allocation3 + $0x8] sm:$0xff] %v1084
    %1091 = vst [vmem:[#allocation3 + $0x10] sm:$0xff] %v1085
    %1092 = vst [vmem:[#allocation3 + $0x18] sm:$0xff] %v1086
    %1093 = vst [vmem:[#allocation3 + $0x20] sm:$0xff] %v1087
    %1094 = vst [vmem:[#allocation3 + $0x28] sm:$0xff] %v1088
    // Predicated region
    $region42: #{tpu_custom_call.1} parent=1 // pred_check
      %p1095 = pneg %p33
    $region43: #{tpu_custom_call.1} parent=1 // pred_check_branch
      %1097 = sbr.rel (%p1095) target = $region45
    $region44: #{tpu_custom_call.1} parent=1 // pred_region
      %v1098 = vld [vmem:[#allocation3] sm:$0xff]
      %v1099 = vld [vmem:[#allocation3 + $0x8] sm:$0xff]
      %v1100 = vld [vmem:[#allocation3 + $0x10] sm:$0xff]
      %v1101 = vld [vmem:[#allocation3 + $0x18] sm:$0xff]
      %v1102 = vld [vmem:[#allocation3 + $0x20] sm:$0xff]
      %v1103 = vld [vmem:[#allocation3 + $0x28] sm:$0xff]
      %v1104 = vld [vmem:[%s8] sm:$0x1]
      %v1106 = vperm.slane %v1104, 0
      %v1108 = vadd.f32 %v1098, %v1106
      %v1109 = vadd.f32 %v1099, %v1106
      %v1110 = vadd.f32 %v1100, %v1106
      %v1111 = vadd.f32 %v1101, %v1106
      %v1112 = vadd.f32 %v1102, %v1106
      %v1113 = vadd.f32 %v1103, %v1106
      %1114 = vst [vmem:[#allocation4] sm:$0xff] %v1108
      %1115 = vst [vmem:[#allocation4 + $0x8] sm:$0xff] %v1109
      %1116 = vst [vmem:[#allocation4 + $0x10] sm:$0xff] %v1110
      %1117 = vst [vmem:[#allocation4 + $0x18] sm:$0xff] %v1111
      %1118 = vst [vmem:[#allocation4 + $0x20] sm:$0xff] %v1112
      %1119 = vst [vmem:[#allocation4 + $0x28] sm:$0xff] %v1113
    $region45: #{tpu_custom_call.1} parent=1 // pred_fallthru
      _
    // Predicated region
    $region46: #{tpu_custom_call.1} parent=1 // pred_check
      _
    $region47: #{tpu_custom_call.1} parent=1 // pred_check_branch
      %1121 = sbr.rel (0) target = $region49
    $region48: #{tpu_custom_call.1} parent=1 // pred_region
      %1123 = vsyncadd [#allocation5], 0
      %s1124 = sshll.u32 [#allocation4], 4
      %s1125 = int_to_ptr.vmem [resolvable:$true] %s1124
      %s1126 = sshll.u32 %s9, 4
      %s1127 = int_to_ptr.hbm [resolvable:$true] %s1126
      %1132 = dma.vmem_to_hbm [thread:$0]  %s1125, 768, %s1127, [#allocation5], 128, 128, 8
    $region49: #{tpu_custom_call.1} parent=1 // pred_fallthru
      _
    // Predicated region
    $region50: #{tpu_custom_call.1} parent=1 // pred_check
      _
    $region51: #{tpu_custom_call.1} parent=1 // pred_check_branch
      %1134 = sbr.rel (0) target = $region53
    $region52: #{tpu_custom_call.1} parent=1 // pred_region
      %1136 = dma.done [#allocation5], 768
    $region53: #{tpu_custom_call.1} parent=1 // pred_fallthru
      _
    %1137 = vsyncpa [#allocation5], 1

</llo_original>
